<compile_context>
chip_gen: v6e
topology: v6e:2x2x1
jax: 0.10.0
libtpu: 0.0.40
codegen_flags: <defaults>
</compile_context>

<pallas_src>
import math
import functools

import jax
import jax.numpy as jnp
from jax.experimental import pallas as pl
from jax.experimental.pallas import tpu as pltpu


_INV_SQRT2 = 1.0 / math.sqrt(2.0)
_VMEM_LIMIT_BYTES = 32 * 1024 * 1024


# ----------------------------- in-kernel math helpers -----------------------------

def _erf(x):
    # Abramowitz & Stegun 7.1.26 rational approximation, |err| ~1.5e-7 (~f32 eps).
    # The divide is routed to the EUP (pl.reciprocal) so it shares the transcendental
    # slot with the exp instead of occupying a VALU slot.
    a1, a2, a3, a4, a5 = 0.254829592, -0.284496736, 1.421413741, -1.453152027, 1.061405429
    p = 0.3275911
    sgn = jnp.where(x >= 0.0, 1.0, -1.0)
    ax = jnp.abs(x)
    t = pl.reciprocal(1.0 + p * ax, approx=True)
    poly = ((((a5 * t + a4) * t + a3) * t + a2) * t + a1) * t
    return sgn * (1.0 - poly * jnp.exp(-ax * ax))


def _gelu_exact(x):
    # matches torch.nn.functional.gelu (default, erf-based)
    return 0.5 * x * (1.0 + _erf(x * _INV_SQRT2))


# ----------------------------- tiling helper -----------------------------

def _pick_lane_tile(L, max_tile, prefer_multi=False):
    """Largest multiple-of-128 divisor of L that is <= max_tile.
    If prefer_multi, prefer a tile that leaves >= 2 grid steps (megacore / v7x)."""
    if L % 128 != 0:
        return L                      # fall back to one full (lane-exact) block
    cands = [t for t in range(128, min(L, max_tile) + 1, 128) if L % t == 0]
    if not cands:
        return L
    if prefer_multi:
        multi = [t for t in cands if L // t >= 2]
        if multi:
            return max(multi)
    return max(cands)


# ----------------------------- Pallas kernels -----------------------------

def _spectral_mul_kernel(xr_ref, xi_ref, wr_ref, wd_ref, ws_ref, or_ref, oi_ref):
    """One lane-tile of the complex channel contraction (all 4 corners folded into lanes).

    xr/xi: (B, Ci, Lt)   wr/wd/ws: (Ci, Co, Lt)   out: (B, Co, Lt)
    wd = wi - wr, ws = wr + wi are precomputed so the complex MAC uses the
    3-multiply Gauss product (k1 = wr*(xr+xi); real = k1 - xi*ws; imag = k1 + xr*wd).
    """
    xr = xr_ref[...]
    xi = xi_ref[...]
    wr = wr_ref[...]
    wd = wd_ref[...]
    ws = ws_ref[...]

    B, Ci, Lt = xr.shape
    Co = wr.shape[1]

    acc_r = jnp.zeros((B, Co, Lt), jnp.float32)
    acc_i = jnp.zeros((B, Co, Lt), jnp.float32)
    for i in range(Ci):                       # Ci is small & static -> unrolled
        xr_i = xr[:, i:i + 1, :]              # (B, 1, Lt)
        xi_i = xi[:, i:i + 1, :]
        t_i = xr_i + xi_i                     # shared term, no Co factor
        k1 = t_i * wr[i][None]                # (B, Co, Lt)
        acc_r = acc_r + (k1 - xi_i * ws[i][None])
        acc_i = acc_i + (k1 + xr_i * wd[i][None])

    or_ref[...] = acc_r
    oi_ref[...] = acc_i


def _fused_kernel(x_ref, x1_ref, w_ref, add_ref, o_ref, *, use_mxu):
    """Per (batch, S-tile) fused pointwise path:
       gelu( spectral_branch + (W @ x + conv_bias + theta_emb + time_emb) ).

    x/x1: (1, C, St)   w: (Co, Ci)   add: (1, C, 1) = conv_bias + theta_vec + time_vec
    """
    xb = x_ref[0]                                                        # (Ci, St)
    if use_mxu:
        y = jnp.dot(w_ref[...], xb, preferred_element_type=jnp.float32)
    else:
        # small channel count: an MXU contraction of width C<32 wastes the systolic
        # array and pays push/drain latency; do the channel mix as VPU broadcast-MACs.
        w = w_ref[...]                                                   # (Co, Ci)
        Ci = xb.shape[0]
        y = w[:, 0:1] * xb[0:1, :]                                       # (Co, St)
        for i in range(1, Ci):
            y = y + w[:, i:i + 1] * xb[i:i + 1, :]
    y = y + add_ref[0] + x1_ref[0]                                       # bias/emb + spectral branch
    o_ref[0] = _gelu_exact(y)


# ----------------------------- wrappers -----------------------------

def spectral_conv3d(x, spec_wr, spec_wi, m1, m2, m3):
    """SpectralConv3d.forward.  spec_wr/spec_wi: (4, Ci, Co, m1, m2, m3)."""
    B, C, D1, D2, D3 = x.shape
    assert 2 * m1 <= D1 and 2 * m2 <= D2 and m3 <= D3 // 2 + 1, \
        "modes must satisfy 2*m1<=D1, 2*m2<=D2, m3<=D3//2+1 (PyTorch precondition)"
    M = m1 * m2 * m3
    L = 4 * M

    # TODO(synk): 3D rFFT / irFFT have no Pallas TPU primitive; computed in plain JAX (XLA FFT).
    x_ft = jnp.fft.rfftn(x, axes=(-3, -2, -1))                           # (B, C, D1, D2, D3//2+1) c64

    # fold the 4 corners onto the lane axis (lane = corner*M + flat_mode)
    corners = (
        x_ft[:, :, :m1, :m2, :m3],
        x_ft[:, :, -m1:, :m2, :m3],
        x_ft[:, :, :m1, -m2:, :m3],
        x_ft[:, :, -m1:, -m2:, :m3],
    )
    xc = jnp.concatenate([c.reshape(B, C, M) for c in corners], axis=-1)  # (B, C, L)
    xr = jnp.real(xc).astype(jnp.float32)
    xi = jnp.imag(xc).astype(jnp.float32)

    # weights: (4, Ci, Co, m1, m2, m3) -> (Ci, Co, L) with matching lane layout
    wr = jnp.moveaxis(spec_wr.reshape(4, C, C, M), 0, 2).reshape(C, C, L).astype(jnp.float32)
    wi = jnp.moveaxis(spec_wi.reshape(4, C, C, M), 0, 2).reshape(C, C, L).astype(jnp.float32)
    wd = wi - wr          # Gauss 3-multiply complex product terms
    ws = wr + wi

    lt = _pick_lane_tile(L, max_tile=512, prefer_multi=True)
    grid = (L // lt,)

    out_sd = jax.ShapeDtypeStruct((B, C, L), jnp.float32)
    or_, oi_ = pl.pallas_call(
        _spectral_mul_kernel,
        out_shape=(out_sd, out_sd),
        grid=grid,
        in_specs=[
            pl.BlockSpec((B, C, lt), lambda l: (0, 0, l)),
            pl.BlockSpec((B, C, lt), lambda l: (0, 0, l)),
            pl.BlockSpec((C, C, lt), lambda l: (0, 0, l)),
            pl.BlockSpec((C, C, lt), lambda l: (0, 0, l)),
            pl.BlockSpec((C, C, lt), lambda l: (0, 0, l)),
        ],
        out_specs=(
            pl.BlockSpec((B, C, lt), lambda l: (0, 0, l)),
            pl.BlockSpec((B, C, lt), lambda l: (0, 0, l)),
        ),
        compiler_params=pltpu.CompilerParams(
            dimension_semantics=("parallel",),
            vmem_limit_bytes=_VMEM_LIMIT_BYTES,
        ),
    )(xr, xi, wr, wd, ws)

    out_c = jax.lax.complex(or_, oi_).reshape(B, C, 4, m1, m2, m3)
    out_c = jnp.moveaxis(out_c, 2, 0)                                     # (4, B, C, m1, m2, m3)

    out_ft = jnp.zeros((B, C, D1, D2, D3 // 2 + 1), dtype=jnp.complex64)
    out_ft = out_ft.at[:, :, :m1, :m2, :m3].set(out_c[0])
    out_ft = out_ft.at[:, :, -m1:, :m2, :m3].set(out_c[1])
    out_ft = out_ft.at[:, :, :m1, -m2:, :m3].set(out_c[2])
    out_ft = out_ft.at[:, :, -m1:, -m2:, :m3].set(out_c[3])

    return jnp.fft.irfftn(out_ft, s=(D1, D2, D3), axes=(-3, -2, -1)).astype(jnp.float32)


def _emb_mlp_jax(v, w1, b1, w2, b2, act):
    """Linear -> act -> Linear (PyTorch (out, in) weight layout).
    Kept in plain JAX: these (B, few) matmuls are far smaller than a pallas_call launch."""
    h = v @ w1.T + b1
    if act == "gelu":
        h = jax.nn.gelu(h, approximate=False)      # matches torch F.gelu (erf)
    else:                                          # Swish() = x * sigmoid(x)
        h = h * jax.nn.sigmoid(h)
    return h @ w2.T + b2


def fused_pointwise(x_flat, x1_flat, conv_w, add_vec):
    """x_flat, x1_flat: (B, C, S); conv_w: (Cout, Cin); add_vec: (B, C, 1)."""
    B, C, S = x_flat.shape
    st = _pick_lane_tile(S, max_tile=1024, prefer_multi=False)
    grid = (B, S // st)
    use_mxu = C >= 32        # small channel counts: VPU broadcast-MAC beats a <32-wide MXU contraction

    return pl.pallas_call(
        functools.partial(_fused_kernel, use_mxu=use_mxu),
        out_shape=jax.ShapeDtypeStruct((B, C, S), jnp.float32),
        grid=grid,
        in_specs=[
            pl.BlockSpec((1, C, st), lambda b, s: (b, 0, s)),
            pl.BlockSpec((1, C, st), lambda b, s: (b, 0, s)),
            pl.BlockSpec((C, C), lambda b, s: (0, 0)),
            pl.BlockSpec((1, C, 1), lambda b, s: (b, 0, 0)),
        ],
        out_specs=pl.BlockSpec((1, C, st), lambda b, s: (b, 0, s)),
        compiler_params=pltpu.CompilerParams(
            dimension_semantics=("parallel", "parallel"),
            vmem_limit_bytes=_VMEM_LIMIT_BYTES,
        ),
    )(x_flat, x1_flat, conv_w, add_vec)


def fno_block_forward(params, x, theta, t, *, modes1, modes2, modes3):
    """FNOBlock_t_theta3d.forward:  gelu( SpectralConv3d(x) + MLP_t_theta3d(x, theta, t) )."""
    B, C, D1, D2, D3 = x.shape
    S = D1 * D2 * D3

    # spectral branch
    x1 = spectral_conv3d(x, params["spec_wr"], params["spec_wi"], modes1, modes2, modes3)

    # conditioning embeddings (tiny -> plain JAX, folded into the fused kernel via add_vec)
    theta_vec = _emb_mlp_jax(theta, params["theta_w1"], params["theta_b1"],
                             params["theta_w2"], params["theta_b2"], act="gelu")
    t_vec = _emb_mlp_jax(t, params["time_w1"], params["time_b1"],
                         params["time_w2"], params["time_b2"], act="swish")

    # per-(batch, channel) constant broadcast over the spatial dims
    add_vec = (params["conv_b"][None, :] + theta_vec + t_vec)[:, :, None]   # (B, C, 1)

    out = fused_pointwise(x.reshape(B, C, S), x1.reshape(B, C, S),
                          params["conv_w"], add_vec)
    return out.reshape(B, C, D1, D2, D3)


# ----------------------------- deterministic parameter init -----------------------------

def init_params(key, modes1, modes2, modes3, width, theta_width):
    C = width
    t_ch = 4 * width
    keys = jax.random.split(key, 16)
    scale = 1.0 / (C * C)

    def complex_w(k):
        k1, k2 = jax.random.split(k)
        shape = (C, C, modes1, modes2, modes3)
        return (scale * jax.random.uniform(k1, shape, jnp.float32),
                scale * jax.random.uniform(k2, shape, jnp.float32))

    w1r, w1i = complex_w(keys[0])
    w2r, w2i = complex_w(keys[1])
    w3r, w3i = complex_w(keys[2])
    w4r, w4i = complex_w(keys[3])

    return {
        # SpectralConv3d weights1..4 (real / imag parts), stacked along a "corner" axis
        "spec_wr": jnp.stack([w1r, w2r, w3r, w4r], axis=0),
        "spec_wi": jnp.stack([w1i, w2i, w3i, w4i], axis=0),
        # MLP_t_theta3d.mlp1 (1x1x1 Conv3d)  -> dense (Cout, Cin) + bias
        "conv_w": jax.random.normal(keys[4], (C, C), jnp.float32) / math.sqrt(C),
        "conv_b": 0.02 * jax.random.normal(keys[5], (C,), jnp.float32),
        # time_emb1 / time_emb2 (Linear, PyTorch (out, in) layout)
        "time_w1": jax.random.normal(keys[6], (C, t_ch), jnp.float32) / math.sqrt(t_ch),
        "time_b1": 0.02 * jax.random.normal(keys[7], (C,), jnp.float32),
        "time_w2": jax.random.normal(keys[8], (C, C), jnp.float32) / math.sqrt(C),
        "time_b2": 0.02 * jax.random.normal(keys[9], (C,), jnp.float32),
        # theta_emb1 / theta_emb2
        "theta_w1": jax.random.normal(keys[10], (C, theta_width), jnp.float32) / math.sqrt(theta_width),
        "theta_b1": 0.02 * jax.random.normal(keys[11], (C,), jnp.float32),
        "theta_w2": jax.random.normal(keys[12], (C, C), jnp.float32) / math.sqrt(C),
        "theta_b2": 0.02 * jax.random.normal(keys[13], (C,), jnp.float32),
    }


# ----------------------------- main -----------------------------

if __name__ == "__main__":
    B = 2
    width = 8            # FNO width (channels)
    theta_width = 4
    modes1 = modes2 = modes3 = 4
    D1 = D2 = D3 = 8

    key = jax.random.PRNGKey(0)
    kx, kth, kt, kp = jax.random.split(key, 4)

    x = jax.random.normal(kx, (B, width, D1, D2, D3), jnp.float32)       # NCDHW
    theta = jax.random.normal(kth, (B, theta_width), jnp.float32)
    t = jax.random.normal(kt, (B, 4 * width), jnp.float32)               # t_channels = width * 4

    params = init_params(kp, modes1, modes2, modes3, width, theta_width)

    fwd = jax.jit(functools.partial(fno_block_forward,
                                    modes1=modes1, modes2=modes2, modes3=modes3))
    out = fwd(params, x, theta, t)
    jax.block_until_ready(out)

    assert out.shape == (B, width, D1, D2, D3)
    assert out.dtype == jnp.float32
    print("KERNEL_OK")
</pallas_src>

<mosaic_0001>
module attributes {stable_mosaic.version = 11 : i64} {
  func.func @_spectral_mul_kernel(%arg0: i32, %arg1: memref<2x8x128xf32, #tpu.memory_space<vmem>>, %arg2: memref<2x8x128xf32, #tpu.memory_space<vmem>>, %arg3: memref<8x8x128xf32, #tpu.memory_space<vmem>>, %arg4: memref<8x8x128xf32, #tpu.memory_space<vmem>>, %arg5: memref<8x8x128xf32, #tpu.memory_space<vmem>>, %arg6: memref<2x8x128xf32, #tpu.memory_space<vmem>>, %arg7: memref<2x8x128xf32, #tpu.memory_space<vmem>>) attributes {dimension_semantics = [#tpu.dimension_semantics<parallel>], iteration_bounds = array<i64: 2>, scalar_prefetch = 0 : i64, scratch_operands = 0 : i64, tpu.core_type = #tpu.core_type<tc>, window_params = [{transform_indices = @transform_0, window_bounds = array<i64: 2, 8, 128>}, {transform_indices = @transform_1, window_bounds = array<i64: 2, 8, 128>}, {transform_indices = @transform_2, window_bounds = array<i64: 8, 8, 128>}, {transform_indices = @transform_3, window_bounds = array<i64: 8, 8, 128>}, {transform_indices = @transform_4, window_bounds = array<i64: 8, 8, 128>}, {transform_indices = @transform_5, window_bounds = array<i64: 2, 8, 128>}, {transform_indices = @transform_6, window_bounds = array<i64: 2, 8, 128>}]} {
    %c0 = arith.constant 0 : index
    %c0_0 = arith.constant 0 : index
    %c0_1 = arith.constant 0 : index
    %0 = vector.load %arg1[%c0, %c0_0, %c0_1] : memref<2x8x128xf32, #tpu.memory_space<vmem>>, vector<2x8x128xf32>
    %c0_2 = arith.constant 0 : index
    %c0_3 = arith.constant 0 : index
    %c0_4 = arith.constant 0 : index
    %1 = vector.load %arg2[%c0_2, %c0_3, %c0_4] : memref<2x8x128xf32, #tpu.memory_space<vmem>>, vector<2x8x128xf32>
    %c0_5 = arith.constant 0 : index
    %c0_6 = arith.constant 0 : index
    %c0_7 = arith.constant 0 : index
    %2 = vector.load %arg3[%c0_5, %c0_6, %c0_7] : memref<8x8x128xf32, #tpu.memory_space<vmem>>, vector<8x8x128xf32>
    %c0_8 = arith.constant 0 : index
    %c0_9 = arith.constant 0 : index
    %c0_10 = arith.constant 0 : index
    %3 = vector.load %arg4[%c0_8, %c0_9, %c0_10] : memref<8x8x128xf32, #tpu.memory_space<vmem>>, vector<8x8x128xf32>
    %c0_11 = arith.constant 0 : index
    %c0_12 = arith.constant 0 : index
    %c0_13 = arith.constant 0 : index
    %4 = vector.load %arg5[%c0_11, %c0_12, %c0_13] : memref<8x8x128xf32, #tpu.memory_space<vmem>>, vector<8x8x128xf32>
    %cst = arith.constant 0.000000e+00 : f32
    %5 = vector.broadcast %cst : f32 to vector<2x8x128xf32>
    %cst_14 = arith.constant 0.000000e+00 : f32
    %6 = vector.broadcast %cst_14 : f32 to vector<2x8x128xf32>
    %7 = vector.extract_strided_slice %0 {offsets = [0, 0, 0], sizes = [2, 1, 128], strides = [1, 1, 1]} : vector<2x8x128xf32> to vector<2x1x128xf32>
    %8 = vector.extract_strided_slice %1 {offsets = [0, 0, 0], sizes = [2, 1, 128], strides = [1, 1, 1]} : vector<2x8x128xf32> to vector<2x1x128xf32>
    %9 = arith.addf %7, %8 : vector<2x1x128xf32>
    %10 = vector.extract_strided_slice %2 {offsets = [0, 0, 0], sizes = [1, 8, 128], strides = [1, 1, 1]} : vector<8x8x128xf32> to vector<1x8x128xf32>
    %11 = vector.shape_cast %10 : vector<1x8x128xf32> to vector<8x128xf32>
    %12 = vector.shape_cast %11 : vector<8x128xf32> to vector<1x8x128xf32>
    %13 = vector.broadcast %9 : vector<2x1x128xf32> to vector<2x8x128xf32>
    %14 = vector.broadcast %12 : vector<1x8x128xf32> to vector<2x8x128xf32>
    %15 = arith.mulf %13, %14 : vector<2x8x128xf32>
    %16 = vector.extract_strided_slice %4 {offsets = [0, 0, 0], sizes = [1, 8, 128], strides = [1, 1, 1]} : vector<8x8x128xf32> to vector<1x8x128xf32>
    %17 = vector.shape_cast %16 : vector<1x8x128xf32> to vector<8x128xf32>
    %18 = vector.shape_cast %17 : vector<8x128xf32> to vector<1x8x128xf32>
    %19 = vector.broadcast %8 : vector<2x1x128xf32> to vector<2x8x128xf32>
    %20 = vector.broadcast %18 : vector<1x8x128xf32> to vector<2x8x128xf32>
    %21 = arith.mulf %19, %20 : vector<2x8x128xf32>
    %22 = arith.subf %15, %21 : vector<2x8x128xf32>
    %23 = arith.addf %5, %22 : vector<2x8x128xf32>
    %24 = vector.extract_strided_slice %3 {offsets = [0, 0, 0], sizes = [1, 8, 128], strides = [1, 1, 1]} : vector<8x8x128xf32> to vector<1x8x128xf32>
    %25 = vector.shape_cast %24 : vector<1x8x128xf32> to vector<8x128xf32>
    %26 = vector.shape_cast %25 : vector<8x128xf32> to vector<1x8x128xf32>
    %27 = vector.broadcast %7 : vector<2x1x128xf32> to vector<2x8x128xf32>
    %28 = vector.broadcast %26 : vector<1x8x128xf32> to vector<2x8x128xf32>
    %29 = arith.mulf %27, %28 : vector<2x8x128xf32>
    %30 = arith.addf %15, %29 : vector<2x8x128xf32>
    %31 = arith.addf %6, %30 : vector<2x8x128xf32>
    %32 = vector.extract_strided_slice %0 {offsets = [0, 1, 0], sizes = [2, 1, 128], strides = [1, 1, 1]} : vector<2x8x128xf32> to vector<2x1x128xf32>
    %33 = vector.extract_strided_slice %1 {offsets = [0, 1, 0], sizes = [2, 1, 128], strides = [1, 1, 1]} : vector<2x8x128xf32> to vector<2x1x128xf32>
    %34 = arith.addf %32, %33 : vector<2x1x128xf32>
    %35 = vector.extract_strided_slice %2 {offsets = [1, 0, 0], sizes = [1, 8, 128], strides = [1, 1, 1]} : vector<8x8x128xf32> to vector<1x8x128xf32>
    %36 = vector.shape_cast %35 : vector<1x8x128xf32> to vector<8x128xf32>
    %37 = vector.shape_cast %36 : vector<8x128xf32> to vector<1x8x128xf32>
    %38 = vector.broadcast %34 : vector<2x1x128xf32> to vector<2x8x128xf32>
    %39 = vector.broadcast %37 : vector<1x8x128xf32> to vector<2x8x128xf32>
    %40 = arith.mulf %38, %39 : vector<2x8x128xf32>
    %41 = vector.extract_strided_slice %4 {offsets = [1, 0, 0], sizes = [1, 8, 128], strides = [1, 1, 1]} : vector<8x8x128xf32> to vector<1x8x128xf32>
    %42 = vector.shape_cast %41 : vector<1x8x128xf32> to vector<8x128xf32>
    %43 = vector.shape_cast %42 : vector<8x128xf32> to vector<1x8x128xf32>
    %44 = vector.broadcast %33 : vector<2x1x128xf32> to vector<2x8x128xf32>
    %45 = vector.broadcast %43 : vector<1x8x128xf32> to vector<2x8x128xf32>
    %46 = arith.mulf %44, %45 : vector<2x8x128xf32>
    %47 = arith.subf %40, %46 : vector<2x8x128xf32>
    %48 = arith.addf %23, %47 : vector<2x8x128xf32>
    %49 = vector.extract_strided_slice %3 {offsets = [1, 0, 0], sizes = [1, 8, 128], strides = [1, 1, 1]} : vector<8x8x128xf32> to vector<1x8x128xf32>
    %50 = vector.shape_cast %49 : vector<1x8x128xf32> to vector<8x128xf32>
    %51 = vector.shape_cast %50 : vector<8x128xf32> to vector<1x8x128xf32>
    %52 = vector.broadcast %32 : vector<2x1x128xf32> to vector<2x8x128xf32>
    %53 = vector.broadcast %51 : vector<1x8x128xf32> to vector<2x8x128xf32>
    %54 = arith.mulf %52, %53 : vector<2x8x128xf32>
    %55 = arith.addf %40, %54 : vector<2x8x128xf32>
    %56 = arith.addf %31, %55 : vector<2x8x128xf32>
    %57 = vector.extract_strided_slice %0 {offsets = [0, 2, 0], sizes = [2, 1, 128], strides = [1, 1, 1]} : vector<2x8x128xf32> to vector<2x1x128xf32>
    %58 = vector.extract_strided_slice %1 {offsets = [0, 2, 0], sizes = [2, 1, 128], strides = [1, 1, 1]} : vector<2x8x128xf32> to vector<2x1x128xf32>
    %59 = arith.addf %57, %58 : vector<2x1x128xf32>
    %60 = vector.extract_strided_slice %2 {offsets = [2, 0, 0], sizes = [1, 8, 128], strides = [1, 1, 1]} : vector<8x8x128xf32> to vector<1x8x128xf32>
    %61 = vector.shape_cast %60 : vector<1x8x128xf32> to vector<8x128xf32>
    %62 = vector.shape_cast %61 : vector<8x128xf32> to vector<1x8x128xf32>
    %63 = vector.broadcast %59 : vector<2x1x128xf32> to vector<2x8x128xf32>
    %64 = vector.broadcast %62 : vector<1x8x128xf32> to vector<2x8x128xf32>
    %65 = arith.mulf %63, %64 : vector<2x8x128xf32>
    %66 = vector.extract_strided_slice %4 {offsets = [2, 0, 0], sizes = [1, 8, 128], strides = [1, 1, 1]} : vector<8x8x128xf32> to vector<1x8x128xf32>
    %67 = vector.shape_cast %66 : vector<1x8x128xf32> to vector<8x128xf32>
    %68 = vector.shape_cast %67 : vector<8x128xf32> to vector<1x8x128xf32>
    %69 = vector.broadcast %58 : vector<2x1x128xf32> to vector<2x8x128xf32>
    %70 = vector.broadcast %68 : vector<1x8x128xf32> to vector<2x8x128xf32>
    %71 = arith.mulf %69, %70 : vector<2x8x128xf32>
    %72 = arith.subf %65, %71 : vector<2x8x128xf32>
    %73 = arith.addf %48, %72 : vector<2x8x128xf32>
    %74 = vector.extract_strided_slice %3 {offsets = [2, 0, 0], sizes = [1, 8, 128], strides = [1, 1, 1]} : vector<8x8x128xf32> to vector<1x8x128xf32>
    %75 = vector.shape_cast %74 : vector<1x8x128xf32> to vector<8x128xf32>
    %76 = vector.shape_cast %75 : vector<8x128xf32> to vector<1x8x128xf32>
    %77 = vector.broadcast %57 : vector<2x1x128xf32> to vector<2x8x128xf32>
    %78 = vector.broadcast %76 : vector<1x8x128xf32> to vector<2x8x128xf32>
    %79 = arith.mulf %77, %78 : vector<2x8x128xf32>
    %80 = arith.addf %65, %79 : vector<2x8x128xf32>
    %81 = arith.addf %56, %80 : vector<2x8x128xf32>
    %82 = vector.extract_strided_slice %0 {offsets = [0, 3, 0], sizes = [2, 1, 128], strides = [1, 1, 1]} : vector<2x8x128xf32> to vector<2x1x128xf32>
    %83 = vector.extract_strided_slice %1 {offsets = [0, 3, 0], sizes = [2, 1, 128], strides = [1, 1, 1]} : vector<2x8x128xf32> to vector<2x1x128xf32>
    %84 = arith.addf %82, %83 : vector<2x1x128xf32>
    %85 = vector.extract_strided_slice %2 {offsets = [3, 0, 0], sizes = [1, 8, 128], strides = [1, 1, 1]} : vector<8x8x128xf32> to vector<1x8x128xf32>
    %86 = vector.shape_cast %85 : vector<1x8x128xf32> to vector<8x128xf32>
    %87 = vector.shape_cast %86 : vector<8x128xf32> to vector<1x8x128xf32>
    %88 = vector.broadcast %84 : vector<2x1x128xf32> to vector<2x8x128xf32>
    %89 = vector.broadcast %87 : vector<1x8x128xf32> to vector<2x8x128xf32>
    %90 = arith.mulf %88, %89 : vector<2x8x128xf32>
    %91 = vector.extract_strided_slice %4 {offsets = [3, 0, 0], sizes = [1, 8, 128], strides = [1, 1, 1]} : vector<8x8x128xf32> to vector<1x8x128xf32>
    %92 = vector.shape_cast %91 : vector<1x8x128xf32> to vector<8x128xf32>
    %93 = vector.shape_cast %92 : vector<8x128xf32> to vector<1x8x128xf32>
    %94 = vector.broadcast %83 : vector<2x1x128xf32> to vector<2x8x128xf32>
    %95 = vector.broadcast %93 : vector<1x8x128xf32> to vector<2x8x128xf32>
    %96 = arith.mulf %94, %95 : vector<2x8x128xf32>
    %97 = arith.subf %90, %96 : vector<2x8x128xf32>
    %98 = arith.addf %73, %97 : vector<2x8x128xf32>
    %99 = vector.extract_strided_slice %3 {offsets = [3, 0, 0], sizes = [1, 8, 128], strides = [1, 1, 1]} : vector<8x8x128xf32> to vector<1x8x128xf32>
    %100 = vector.shape_cast %99 : vector<1x8x128xf32> to vector<8x128xf32>
    %101 = vector.shape_cast %100 : vector<8x128xf32> to vector<1x8x128xf32>
    %102 = vector.broadcast %82 : vector<2x1x128xf32> to vector<2x8x128xf32>
    %103 = vector.broadcast %101 : vector<1x8x128xf32> to vector<2x8x128xf32>
    %104 = arith.mulf %102, %103 : vector<2x8x128xf32>
    %105 = arith.addf %90, %104 : vector<2x8x128xf32>
    %106 = arith.addf %81, %105 : vector<2x8x128xf32>
    %107 = vector.extract_strided_slice %0 {offsets = [0, 4, 0], sizes = [2, 1, 128], strides = [1, 1, 1]} : vector<2x8x128xf32> to vector<2x1x128xf32>
    %108 = vector.extract_strided_slice %1 {offsets = [0, 4, 0], sizes = [2, 1, 128], strides = [1, 1, 1]} : vector<2x8x128xf32> to vector<2x1x128xf32>
    %109 = arith.addf %107, %108 : vector<2x1x128xf32>
    %110 = vector.extract_strided_slice %2 {offsets = [4, 0, 0], sizes = [1, 8, 128], strides = [1, 1, 1]} : vector<8x8x128xf32> to vector<1x8x128xf32>
    %111 = vector.shape_cast %110 : vector<1x8x128xf32> to vector<8x128xf32>
    %112 = vector.shape_cast %111 : vector<8x128xf32> to vector<1x8x128xf32>
    %113 = vector.broadcast %109 : vector<2x1x128xf32> to vector<2x8x128xf32>
    %114 = vector.broadcast %112 : vector<1x8x128xf32> to vector<2x8x128xf32>
    %115 = arith.mulf %113, %114 : vector<2x8x128xf32>
    %116 = vector.extract_strided_slice %4 {offsets = [4, 0, 0], sizes = [1, 8, 128], strides = [1, 1, 1]} : vector<8x8x128xf32> to vector<1x8x128xf32>
    %117 = vector.shape_cast %116 : vector<1x8x128xf32> to vector<8x128xf32>
    %118 = vector.shape_cast %117 : vector<8x128xf32> to vector<1x8x128xf32>
    %119 = vector.broadcast %108 : vector<2x1x128xf32> to vector<2x8x128xf32>
    %120 = vector.broadcast %118 : vector<1x8x128xf32> to vector<2x8x128xf32>
    %121 = arith.mulf %119, %120 : vector<2x8x128xf32>
    %122 = arith.subf %115, %121 : vector<2x8x128xf32>
    %123 = arith.addf %98, %122 : vector<2x8x128xf32>
    %124 = vector.extract_strided_slice %3 {offsets = [4, 0, 0], sizes = [1, 8, 128], strides = [1, 1, 1]} : vector<8x8x128xf32> to vector<1x8x128xf32>
    %125 = vector.shape_cast %124 : vector<1x8x128xf32> to vector<8x128xf32>
    %126 = vector.shape_cast %125 : vector<8x128xf32> to vector<1x8x128xf32>
    %127 = vector.broadcast %107 : vector<2x1x128xf32> to vector<2x8x128xf32>
    %128 = vector.broadcast %126 : vector<1x8x128xf32> to vector<2x8x128xf32>
    %129 = arith.mulf %127, %128 : vector<2x8x128xf32>
    %130 = arith.addf %115, %129 : vector<2x8x128xf32>
    %131 = arith.addf %106, %130 : vector<2x8x128xf32>
    %132 = vector.extract_strided_slice %0 {offsets = [0, 5, 0], sizes = [2, 1, 128], strides = [1, 1, 1]} : vector<2x8x128xf32> to vector<2x1x128xf32>
    %133 = vector.extract_strided_slice %1 {offsets = [0, 5, 0], sizes = [2, 1, 128], strides = [1, 1, 1]} : vector<2x8x128xf32> to vector<2x1x128xf32>
    %134 = arith.addf %132, %133 : vector<2x1x128xf32>
    %135 = vector.extract_strided_slice %2 {offsets = [5, 0, 0], sizes = [1, 8, 128], strides = [1, 1, 1]} : vector<8x8x128xf32> to vector<1x8x128xf32>
    %136 = vector.shape_cast %135 : vector<1x8x128xf32> to vector<8x128xf32>
    %137 = vector.shape_cast %136 : vector<8x128xf32> to vector<1x8x128xf32>
    %138 = vector.broadcast %134 : vector<2x1x128xf32> to vector<2x8x128xf32>
    %139 = vector.broadcast %137 : vector<1x8x128xf32> to vector<2x8x128xf32>
    %140 = arith.mulf %138, %139 : vector<2x8x128xf32>
    %141 = vector.extract_strided_slice %4 {offsets = [5, 0, 0], sizes = [1, 8, 128], strides = [1, 1, 1]} : vector<8x8x128xf32> to vector<1x8x128xf32>
    %142 = vector.shape_cast %141 : vector<1x8x128xf32> to vector<8x128xf32>
    %143 = vector.shape_cast %142 : vector<8x128xf32> to vector<1x8x128xf32>
    %144 = vector.broadcast %133 : vector<2x1x128xf32> to vector<2x8x128xf32>
    %145 = vector.broadcast %143 : vector<1x8x128xf32> to vector<2x8x128xf32>
    %146 = arith.mulf %144, %145 : vector<2x8x128xf32>
    %147 = arith.subf %140, %146 : vector<2x8x128xf32>
    %148 = arith.addf %123, %147 : vector<2x8x128xf32>
    %149 = vector.extract_strided_slice %3 {offsets = [5, 0, 0], sizes = [1, 8, 128], strides = [1, 1, 1]} : vector<8x8x128xf32> to vector<1x8x128xf32>
    %150 = vector.shape_cast %149 : vector<1x8x128xf32> to vector<8x128xf32>
    %151 = vector.shape_cast %150 : vector<8x128xf32> to vector<1x8x128xf32>
    %152 = vector.broadcast %132 : vector<2x1x128xf32> to vector<2x8x128xf32>
    %153 = vector.broadcast %151 : vector<1x8x128xf32> to vector<2x8x128xf32>
    %154 = arith.mulf %152, %153 : vector<2x8x128xf32>
    %155 = arith.addf %140, %154 : vector<2x8x128xf32>
    %156 = arith.addf %131, %155 : vector<2x8x128xf32>
    %157 = vector.extract_strided_slice %0 {offsets = [0, 6, 0], sizes = [2, 1, 128], strides = [1, 1, 1]} : vector<2x8x128xf32> to vector<2x1x128xf32>
    %158 = vector.extract_strided_slice %1 {offsets = [0, 6, 0], sizes = [2, 1, 128], strides = [1, 1, 1]} : vector<2x8x128xf32> to vector<2x1x128xf32>
    %159 = arith.addf %157, %158 : vector<2x1x128xf32>
    %160 = vector.extract_strided_slice %2 {offsets = [6, 0, 0], sizes = [1, 8, 128], strides = [1, 1, 1]} : vector<8x8x128xf32> to vector<1x8x128xf32>
    %161 = vector.shape_cast %160 : vector<1x8x128xf32> to vector<8x128xf32>
    %162 = vector.shape_cast %161 : vector<8x128xf32> to vector<1x8x128xf32>
    %163 = vector.broadcast %159 : vector<2x1x128xf32> to vector<2x8x128xf32>
    %164 = vector.broadcast %162 : vector<1x8x128xf32> to vector<2x8x128xf32>
    %165 = arith.mulf %163, %164 : vector<2x8x128xf32>
    %166 = vector.extract_strided_slice %4 {offsets = [6, 0, 0], sizes = [1, 8, 128], strides = [1, 1, 1]} : vector<8x8x128xf32> to vector<1x8x128xf32>
    %167 = vector.shape_cast %166 : vector<1x8x128xf32> to vector<8x128xf32>
    %168 = vector.shape_cast %167 : vector<8x128xf32> to vector<1x8x128xf32>
    %169 = vector.broadcast %158 : vector<2x1x128xf32> to vector<2x8x128xf32>
    %170 = vector.broadcast %168 : vector<1x8x128xf32> to vector<2x8x128xf32>
    %171 = arith.mulf %169, %170 : vector<2x8x128xf32>
    %172 = arith.subf %165, %171 : vector<2x8x128xf32>
    %173 = arith.addf %148, %172 : vector<2x8x128xf32>
    %174 = vector.extract_strided_slice %3 {offsets = [6, 0, 0], sizes = [1, 8, 128], strides = [1, 1, 1]} : vector<8x8x128xf32> to vector<1x8x128xf32>
    %175 = vector.shape_cast %174 : vector<1x8x128xf32> to vector<8x128xf32>
    %176 = vector.shape_cast %175 : vector<8x128xf32> to vector<1x8x128xf32>
    %177 = vector.broadcast %157 : vector<2x1x128xf32> to vector<2x8x128xf32>
    %178 = vector.broadcast %176 : vector<1x8x128xf32> to vector<2x8x128xf32>
    %179 = arith.mulf %177, %178 : vector<2x8x128xf32>
    %180 = arith.addf %165, %179 : vector<2x8x128xf32>
    %181 = arith.addf %156, %180 : vector<2x8x128xf32>
    %182 = vector.extract_strided_slice %0 {offsets = [0, 7, 0], sizes = [2, 1, 128], strides = [1, 1, 1]} : vector<2x8x128xf32> to vector<2x1x128xf32>
    %183 = vector.extract_strided_slice %1 {offsets = [0, 7, 0], sizes = [2, 1, 128], strides = [1, 1, 1]} : vector<2x8x128xf32> to vector<2x1x128xf32>
    %184 = arith.addf %182, %183 : vector<2x1x128xf32>
    %185 = vector.extract_strided_slice %2 {offsets = [7, 0, 0], sizes = [1, 8, 128], strides = [1, 1, 1]} : vector<8x8x128xf32> to vector<1x8x128xf32>
    %186 = vector.shape_cast %185 : vector<1x8x128xf32> to vector<8x128xf32>
    %187 = vector.shape_cast %186 : vector<8x128xf32> to vector<1x8x128xf32>
    %188 = vector.broadcast %184 : vector<2x1x128xf32> to vector<2x8x128xf32>
    %189 = vector.broadcast %187 : vector<1x8x128xf32> to vector<2x8x128xf32>
    %190 = arith.mulf %188, %189 : vector<2x8x128xf32>
    %191 = vector.extract_strided_slice %4 {offsets = [7, 0, 0], sizes = [1, 8, 128], strides = [1, 1, 1]} : vector<8x8x128xf32> to vector<1x8x128xf32>
    %192 = vector.shape_cast %191 : vector<1x8x128xf32> to vector<8x128xf32>
    %193 = vector.shape_cast %192 : vector<8x128xf32> to vector<1x8x128xf32>
    %194 = vector.broadcast %183 : vector<2x1x128xf32> to vector<2x8x128xf32>
    %195 = vector.broadcast %193 : vector<1x8x128xf32> to vector<2x8x128xf32>
    %196 = arith.mulf %194, %195 : vector<2x8x128xf32>
    %197 = arith.subf %190, %196 : vector<2x8x128xf32>
    %198 = arith.addf %173, %197 : vector<2x8x128xf32>
    %199 = vector.extract_strided_slice %3 {offsets = [7, 0, 0], sizes = [1, 8, 128], strides = [1, 1, 1]} : vector<8x8x128xf32> to vector<1x8x128xf32>
    %200 = vector.shape_cast %199 : vector<1x8x128xf32> to vector<8x128xf32>
    %201 = vector.shape_cast %200 : vector<8x128xf32> to vector<1x8x128xf32>
    %202 = vector.broadcast %182 : vector<2x1x128xf32> to vector<2x8x128xf32>
    %203 = vector.broadcast %201 : vector<1x8x128xf32> to vector<2x8x128xf32>
    %204 = arith.mulf %202, %203 : vector<2x8x128xf32>
    %205 = arith.addf %190, %204 : vector<2x8x128xf32>
    %206 = arith.addf %181, %205 : vector<2x8x128xf32>
    %c0_15 = arith.constant 0 : index
    %c0_16 = arith.constant 0 : index
    %c0_17 = arith.constant 0 : index
    %207 = vector.load %arg6[%c0_15, %c0_16, %c0_17] : memref<2x8x128xf32, #tpu.memory_space<vmem>>, vector<2x8x128xf32>
    tpu.vector_store %arg6[%c0_15, %c0_16, %c0_17], %198 {strides = array<i32>} : memref<2x8x128xf32, #tpu.memory_space<vmem>>, vector<2x8x128xf32>,
    %c0_18 = arith.constant 0 : index
    %c0_19 = arith.constant 0 : index
    %c0_20 = arith.constant 0 : index
    %208 = vector.load %arg7[%c0_18, %c0_19, %c0_20] : memref<2x8x128xf32, #tpu.memory_space<vmem>>, vector<2x8x128xf32>
    tpu.vector_store %arg7[%c0_18, %c0_19, %c0_20], %206 {strides = array<i32>} : memref<2x8x128xf32, #tpu.memory_space<vmem>>, vector<2x8x128xf32>,
    return
  }
  func.func @transform_0(%arg0: i32) -> (i32, i32, i32) {
    %c0_i32 = arith.constant 0 : i32
    %c0_i32_0 = arith.constant 0 : i32
    %c0_i32_1 = arith.constant 0 : i32
    return %c0_i32, %c0_i32_0, %arg0 : i32, i32, i32
  }
  func.func @transform_1(%arg0: i32) -> (i32, i32, i32) {
    %c0_i32 = arith.constant 0 : i32
    %c0_i32_0 = arith.constant 0 : i32
    %c0_i32_1 = arith.constant 0 : i32
    return %c0_i32, %c0_i32_0, %arg0 : i32, i32, i32
  }
  func.func @transform_2(%arg0: i32) -> (i32, i32, i32) {
    %c0_i32 = arith.constant 0 : i32
    %c0_i32_0 = arith.constant 0 : i32
    %c0_i32_1 = arith.constant 0 : i32
    return %c0_i32, %c0_i32_0, %arg0 : i32, i32, i32
  }
  func.func @transform_3(%arg0: i32) -> (i32, i32, i32) {
    %c0_i32 = arith.constant 0 : i32
    %c0_i32_0 = arith.constant 0 : i32
    %c0_i32_1 = arith.constant 0 : i32
    return %c0_i32, %c0_i32_0, %arg0 : i32, i32, i32
  }
  func.func @transform_4(%arg0: i32) -> (i32, i32, i32) {
    %c0_i32 = arith.constant 0 : i32
    %c0_i32_0 = arith.constant 0 : i32
    %c0_i32_1 = arith.constant 0 : i32
    return %c0_i32, %c0_i32_0, %arg0 : i32, i32, i32
  }
  func.func @transform_5(%arg0: i32) -> (i32, i32, i32) {
    %c0_i32 = arith.constant 0 : i32
    %c0_i32_0 = arith.constant 0 : i32
    %c0_i32_1 = arith.constant 0 : i32
    return %c0_i32, %c0_i32_0, %arg0 : i32, i32, i32
  }
  func.func @transform_6(%arg0: i32) -> (i32, i32, i32) {
    %c0_i32 = arith.constant 0 : i32
    %c0_i32_0 = arith.constant 0 : i32
    %c0_i32_1 = arith.constant 0 : i32
    return %c0_i32, %c0_i32_0, %arg0 : i32, i32, i32
  }
}

module attributes {stable_mosaic.version = 11 : i64} {
  func.func @_fused_kernel(%arg0: i32, %arg1: i32, %arg2: memref<1x8x512xf32, #tpu.memory_space<vmem>>, %arg3: memref<1x8x512xf32, #tpu.memory_space<vmem>>, %arg4: memref<8x8xf32, #tpu.memory_space<vmem>>, %arg5: memref<1x8x1xf32, #tpu.memory_space<vmem>>, %arg6: memref<1x8x512xf32, #tpu.memory_space<vmem>>) attributes {dimension_semantics = [#tpu.dimension_semantics<parallel>, #tpu.dimension_semantics<parallel>], iteration_bounds = array<i64: 2, 1>, scalar_prefetch = 0 : i64, scratch_operands = 0 : i64, tpu.core_type = #tpu.core_type<tc>, window_params = [{transform_indices = @transform_0, window_bounds = array<i64: 1, 8, 512>}, {transform_indices = @transform_1, window_bounds = array<i64: 1, 8, 512>}, {pipeline_mode = #tpu.pipeline_mode<synchronous>, transform_indices = @transform_2, window_bounds = array<i64: 8, 8>}, {transform_indices = @transform_3, window_bounds = array<i64: 1, 8, 1>}, {transform_indices = @transform_4, window_bounds = array<i64: 1, 8, 512>}]} {
    %c0 = arith.constant 0 : index
    %c0_0 = arith.constant 0 : index
    %c0_1 = arith.constant 0 : index
    %0 = vector.load %arg2[%c0, %c0_0, %c0_1] : memref<1x8x512xf32, #tpu.memory_space<vmem>>, vector<1x8x512xf32>
    %1 = vector.shape_cast %0 : vector<1x8x512xf32> to vector<8x512xf32>
    %c0_2 = arith.constant 0 : index
    %c0_3 = arith.constant 0 : index
    %2 = vector.load %arg4[%c0_2, %c0_3] : memref<8x8xf32, #tpu.memory_space<vmem>>, vector<8x8xf32>
    %3 = vector.extract_strided_slice %2 {offsets = [0, 0], sizes = [8, 1], strides = [1, 1]} : vector<8x8xf32> to vector<8x1xf32>
    %4 = vector.extract_strided_slice %1 {offsets = [0, 0], sizes = [1, 512], strides = [1, 1]} : vector<8x512xf32> to vector<1x512xf32>
    %5 = vector.broadcast %3 : vector<8x1xf32> to vector<8x512xf32>
    %6 = vector.broadcast %4 : vector<1x512xf32> to vector<8x512xf32>
    %7 = arith.mulf %5, %6 : vector<8x512xf32>
    %8 = vector.extract_strided_slice %2 {offsets = [0, 1], sizes = [8, 1], strides = [1, 1]} : vector<8x8xf32> to vector<8x1xf32>
    %9 = vector.extract_strided_slice %1 {offsets = [1, 0], sizes = [1, 512], strides = [1, 1]} : vector<8x512xf32> to vector<1x512xf32>
    %10 = vector.broadcast %8 : vector<8x1xf32> to vector<8x512xf32>
    %11 = vector.broadcast %9 : vector<1x512xf32> to vector<8x512xf32>
    %12 = arith.mulf %10, %11 : vector<8x512xf32>
    %13 = arith.addf %7, %12 : vector<8x512xf32>
    %14 = vector.extract_strided_slice %2 {offsets = [0, 2], sizes = [8, 1], strides = [1, 1]} : vector<8x8xf32> to vector<8x1xf32>
    %15 = vector.extract_strided_slice %1 {offsets = [2, 0], sizes = [1, 512], strides = [1, 1]} : vector<8x512xf32> to vector<1x512xf32>
    %16 = vector.broadcast %14 : vector<8x1xf32> to vector<8x512xf32>
    %17 = vector.broadcast %15 : vector<1x512xf32> to vector<8x512xf32>
    %18 = arith.mulf %16, %17 : vector<8x512xf32>
    %19 = arith.addf %13, %18 : vector<8x512xf32>
    %20 = vector.extract_strided_slice %2 {offsets = [0, 3], sizes = [8, 1], strides = [1, 1]} : vector<8x8xf32> to vector<8x1xf32>
    %21 = vector.extract_strided_slice %1 {offsets = [3, 0], sizes = [1, 512], strides = [1, 1]} : vector<8x512xf32> to vector<1x512xf32>
    %22 = vector.broadcast %20 : vector<8x1xf32> to vector<8x512xf32>
    %23 = vector.broadcast %21 : vector<1x512xf32> to vector<8x512xf32>
    %24 = arith.mulf %22, %23 : vector<8x512xf32>
    %25 = arith.addf %19, %24 : vector<8x512xf32>
    %26 = vector.extract_strided_slice %2 {offsets = [0, 4], sizes = [8, 1], strides = [1, 1]} : vector<8x8xf32> to vector<8x1xf32>
    %27 = vector.extract_strided_slice %1 {offsets = [4, 0], sizes = [1, 512], strides = [1, 1]} : vector<8x512xf32> to vector<1x512xf32>
    %28 = vector.broadcast %26 : vector<8x1xf32> to vector<8x512xf32>
    %29 = vector.broadcast %27 : vector<1x512xf32> to vector<8x512xf32>
    %30 = arith.mulf %28, %29 : vector<8x512xf32>
    %31 = arith.addf %25, %30 : vector<8x512xf32>
    %32 = vector.extract_strided_slice %2 {offsets = [0, 5], sizes = [8, 1], strides = [1, 1]} : vector<8x8xf32> to vector<8x1xf32>
    %33 = vector.extract_strided_slice %1 {offsets = [5, 0], sizes = [1, 512], strides = [1, 1]} : vector<8x512xf32> to vector<1x512xf32>
    %34 = vector.broadcast %32 : vector<8x1xf32> to vector<8x512xf32>
    %35 = vector.broadcast %33 : vector<1x512xf32> to vector<8x512xf32>
    %36 = arith.mulf %34, %35 : vector<8x512xf32>
    %37 = arith.addf %31, %36 : vector<8x512xf32>
    %38 = vector.extract_strided_slice %2 {offsets = [0, 6], sizes = [8, 1], strides = [1, 1]} : vector<8x8xf32> to vector<8x1xf32>
    %39 = vector.extract_strided_slice %1 {offsets = [6, 0], sizes = [1, 512], strides = [1, 1]} : vector<8x512xf32> to vector<1x512xf32>
    %40 = vector.broadcast %38 : vector<8x1xf32> to vector<8x512xf32>
    %41 = vector.broadcast %39 : vector<1x512xf32> to vector<8x512xf32>
    %42 = arith.mulf %40, %41 : vector<8x512xf32>
    %43 = arith.addf %37, %42 : vector<8x512xf32>
    %44 = vector.extract_strided_slice %2 {offsets = [0, 7], sizes = [8, 1], strides = [1, 1]} : vector<8x8xf32> to vector<8x1xf32>
    %45 = vector.extract_strided_slice %1 {offsets = [7, 0], sizes = [1, 512], strides = [1, 1]} : vector<8x512xf32> to vector<1x512xf32>
    %46 = vector.broadcast %44 : vector<8x1xf32> to vector<8x512xf32>
    %47 = vector.broadcast %45 : vector<1x512xf32> to vector<8x512xf32>
    %48 = arith.mulf %46, %47 : vector<8x512xf32>
    %49 = arith.addf %43, %48 : vector<8x512xf32>
    %c0_4 = arith.constant 0 : index
    %c0_5 = arith.constant 0 : index
    %c0_6 = arith.constant 0 : index
    %50 = vector.load %arg5[%c0_4, %c0_5, %c0_6] : memref<1x8x1xf32, #tpu.memory_space<vmem>>, vector<1x8x1xf32>
    %51 = vector.shape_cast %50 : vector<1x8x1xf32> to vector<8x1xf32>
    %52 = vector.broadcast %51 : vector<8x1xf32> to vector<8x512xf32>
    %53 = arith.addf %49, %52 : vector<8x512xf32>
    %c0_7 = arith.constant 0 : index
    %c0_8 = arith.constant 0 : index
    %c0_9 = arith.constant 0 : index
    %54 = vector.load %arg3[%c0_7, %c0_8, %c0_9] : memref<1x8x512xf32, #tpu.memory_space<vmem>>, vector<1x8x512xf32>
    %55 = vector.shape_cast %54 : vector<1x8x512xf32> to vector<8x512xf32>
    %56 = arith.addf %53, %55 : vector<8x512xf32>
    %cst = arith.constant 5.000000e-01 : f32
    %57 = vector.broadcast %cst : f32 to vector<8x512xf32>
    %58 = arith.mulf %57, %56 : vector<8x512xf32>
    %cst_10 = arith.constant 0.707106769 : f32
    %59 = vector.broadcast %cst_10 : f32 to vector<8x512xf32>
    %60 = arith.mulf %56, %59 : vector<8x512xf32>
    %cst_11 = arith.constant 0.000000e+00 : f32
    %61 = vector.broadcast %cst_11 : f32 to vector<8x512xf32>
    %62 = arith.cmpf oge, %60, %61 : vector<8x512xf32>
    %cst_12 = arith.constant 1.000000e+00 : f32
    %cst_13 = arith.constant -1.000000e+00 : f32
    %63 = vector.broadcast %cst_12 : f32 to vector<8x512xf32>
    %64 = vector.broadcast %cst_13 : f32 to vector<8x512xf32>
    %65 = arith.select %62, %63, %64 : vector<8x512xi1>, vector<8x512xf32>
    %66 = math.absf %60 : vector<8x512xf32>
    %cst_14 = arith.constant 0.327591091 : f32
    %67 = vector.broadcast %cst_14 : f32 to vector<8x512xf32>
    %68 = arith.mulf %67, %66 : vector<8x512xf32>
    %cst_15 = arith.constant 1.000000e+00 : f32
    %69 = vector.broadcast %cst_15 : f32 to vector<8x512xf32>
    %70 = arith.addf %69, %68 : vector<8x512xf32>
    %71 = tpu.reciprocal %70 {approx = true} : vector<8x512xf32> -> vector<8x512xf32>
    %cst_16 = arith.constant 1.06140542 : f32
    %72 = vector.broadcast %cst_16 : f32 to vector<8x512xf32>
    %73 = arith.mulf %72, %71 : vector<8x512xf32>
    %cst_17 = arith.constant -1.45315206 : f32
    %74 = vector.broadcast %cst_17 : f32 to vector<8x512xf32>
    %75 = arith.addf %73, %74 : vector<8x512xf32>
    %76 = arith.mulf %75, %71 : vector<8x512xf32>
    %cst_18 = arith.constant 1.42141378 : f32
    %77 = vector.broadcast %cst_18 : f32 to vector<8x512xf32>
    %78 = arith.addf %76, %77 : vector<8x512xf32>
    %79 = arith.mulf %78, %71 : vector<8x512xf32>
    %cst_19 = arith.constant -0.284496725 : f32
    %80 = vector.broadcast %cst_19 : f32 to vector<8x512xf32>
    %81 = arith.addf %79, %80 : vector<8x512xf32>
    %82 = arith.mulf %81, %71 : vector<8x512xf32>
    %cst_20 = arith.constant 0.254829586 : f32
    %83 = vector.broadcast %cst_20 : f32 to vector<8x512xf32>
    %84 = arith.addf %82, %83 : vector<8x512xf32>
    %85 = arith.mulf %84, %71 : vector<8x512xf32>
    %cst_21 = arith.constant 0.000000e+00 : f32
    %86 = vector.broadcast %cst_21 : f32 to vector<8x512xf32>
    %87 = arith.subf %86, %66 : vector<8x512xf32>
    %88 = arith.mulf %87, %66 : vector<8x512xf32>
    %89 = math.exp %88 : vector<8x512xf32>
    %90 = arith.mulf %85, %89 : vector<8x512xf32>
    %cst_22 = arith.constant 1.000000e+00 : f32
    %91 = vector.broadcast %cst_22 : f32 to vector<8x512xf32>
    %92 = arith.subf %91, %90 : vector<8x512xf32>
    %93 = arith.mulf %65, %92 : vector<8x512xf32>
    %cst_23 = arith.constant 1.000000e+00 : f32
    %94 = vector.broadcast %cst_23 : f32 to vector<8x512xf32>
    %95 = arith.addf %94, %93 : vector<8x512xf32>
    %96 = arith.mulf %58, %95 : vector<8x512xf32>
    %c0_24 = arith.constant 0 : index
    %c0_25 = arith.constant 0 : index
    %c0_26 = arith.constant 0 : index
    %97 = vector.load %arg6[%c0_24, %c0_25, %c0_26] : memref<1x8x512xf32, #tpu.memory_space<vmem>>, vector<1x8x512xf32>
    %98 = vector.shape_cast %97 : vector<1x8x512xf32> to vector<8x512xf32>
    %99 = vector.shape_cast %96 : vector<8x512xf32> to vector<1x8x512xf32>
    tpu.vector_store %arg6[%c0_24, %c0_25, %c0_26], %99 {strides = array<i32>} : memref<1x8x512xf32, #tpu.memory_space<vmem>>, vector<1x8x512xf32>,
    return
  }
  func.func @transform_0(%arg0: i32, %arg1: i32) -> (i32, i32, i32) {
    %c0_i32 = arith.constant 0 : i32
    %c0_i32_0 = arith.constant 0 : i32
    return %arg0, %c0_i32, %arg1 : i32, i32, i32
  }
  func.func @transform_1(%arg0: i32, %arg1: i32) -> (i32, i32, i32) {
    %c0_i32 = arith.constant 0 : i32
    %c0_i32_0 = arith.constant 0 : i32
    return %arg0, %c0_i32, %arg1 : i32, i32, i32
  }
  func.func @transform_2(%arg0: i32, %arg1: i32) -> (i32, i32) {
    %c0_i32 = arith.constant 0 : i32
    %c0_i32_0 = arith.constant 0 : i32
    %c0_i32_1 = arith.constant 0 : i32
    return %c0_i32, %c0_i32_0 : i32, i32
  }
  func.func @transform_3(%arg0: i32, %arg1: i32) -> (i32, i32, i32) {
    %c0_i32 = arith.constant 0 : i32
    %c0_i32_0 = arith.constant 0 : i32
    %c0_i32_1 = arith.constant 0 : i32
    return %arg0, %c0_i32, %c0_i32_0 : i32, i32, i32
  }
  func.func @transform_4(%arg0: i32, %arg1: i32) -> (i32, i32, i32) {
    %c0_i32 = arith.constant 0 : i32
    %c0_i32_0 = arith.constant 0 : i32
    return %arg0, %c0_i32, %arg1 : i32, i32, i32
  }
}

</mosaic_0001>

<llo_original>
// kernel: fno_block_forward.2
$region0: #{fno_block_forward.2}
  #allocation0 [shape = 'u32[]', space=smem, size = 0x4, offset = 0x4, fixed_abs, tag = 'smem constant byte address 0x4 - core index']
  #allocation1 [shape = 'u32[144,128]{1,0:T(1,128)}', space=vmem, size = 0x12000, scoped, tag = 'internal scratch']
  %s0 = inlined_call_operand.vmem [shape: f32[2,8,256], index: 0, kind: input, shape index: {}]
  %s1 = inlined_call_operand.vmem [shape: f32[2,8,256], index: 1, kind: input, shape index: {}]
  %s2 = inlined_call_operand.vmem [shape: f32[8,8,256], index: 2, kind: input, shape index: {}]
  %s3 = inlined_call_operand.vmem [shape: f32[8,8,256], index: 3, kind: input, shape index: {}]
  %s4 = inlined_call_operand.vmem [shape: f32[8,8,256], index: 4, kind: input, shape index: {}]
  %s5 = inlined_call_operand.vmem [shape: f32[2,8,256], index: 5, kind: output, shape index: {0}]
  %s6 = inlined_call_operand.vmem [shape: f32[2,8,256], index: 6, kind: output, shape index: {1}]
  %7 = xla_tuple %s5, %s6
  %s8 = sld [smem:[#allocation0]]
  $region319: #{fno_block_forward.2} parent=0
    _
  %s10 = ssub.s32 1, %s8
  %s11 = scalar_select 0, %s10, %s8
  $region1: #{fno_block_forward.2} parent=0
    #allocation2 [shape = 'u8[16384]{0}', space=vmem, size = 0x4000, scoped, tag = 'input window, operand 0']
    #allocation3 [shape = 'u8[16384]{0}', space=vmem, size = 0x4000, scoped, tag = 'input window, operand 1']
    #allocation4 [shape = 'u8[65536]{0}', space=vmem, size = 0x10000, scoped, tag = 'input window, operand 2']
    #allocation5 [shape = 'u8[65536]{0}', space=vmem, size = 0x10000, scoped, tag = 'input window, operand 3']
    #allocation6 [shape = 'u8[65536]{0}', space=vmem, size = 0x10000, scoped, tag = 'input window, operand 4']
    #allocation7 [shape = 'u8[16384]{0}', space=vmem, size = 0x4000, scoped, tag = 'output window, operand 0']
    #allocation8 [shape = 'u8[16384]{0}', space=vmem, size = 0x4000, scoped, tag = 'output window, operand 1']
    loop: start=0, step=1, limit=4
    $region2: #{fno_block_forward.2} parent=1 // loop_pre_header
      _
    $region3: #{fno_block_forward.2} parent=1 // loop_header
      %s13 = sphi 0, %s17
      %p14 = scmp.ge.s32.totalorder %s13, 4
      %s23 = sphi 0, %s25
      %s26 = sphi 0, %s23
      %s27 = sphi 0, %s26
      %s43 = sphi 0, %s27
      %s49 = sphi 0, %s51
      %s52 = sphi 0, %s49
      %s53 = sphi 0, %s52
      %s69 = sphi 0, %s53
      %s75 = sphi 0, %s77
      %s78 = sphi 0, %s75
      %s79 = sphi 0, %s78
      %s95 = sphi 0, %s79
      %s101 = sphi 0, %s103
      %s104 = sphi 0, %s101
      %s105 = sphi 0, %s104
      %s121 = sphi 0, %s105
      %s127 = sphi 0, %s129
      %s130 = sphi 0, %s127
      %s131 = sphi 0, %s130
      %s147 = sphi 0, %s131
      %s153 = sphi 0, %s155
      %s156 = sphi 0, %s153
      %s157 = sphi 0, %s156
      %s173 = sphi 0, %s157
      %s179 = sphi 0, %s181
      %s182 = sphi 0, %s179
      %s183 = sphi 0, %s182
      %s199 = sphi 0, %s183
    $region4: #{fno_block_forward.2} parent=1 // loop_header_branch
      %16 = sbr.rel (%p14) target = $region8
    $region5: #{fno_block_forward.2} parent=1 // loop_body
      %s18 = ssub.s32 %s13, 1
      %s19 = ssub.s32 %s13, 2
      %s20 = sadd.s32 %s13, 1
      %s21 = ssub.s32 %s13, %s20
      %p22 = scmp.eq.s32.totalorder %s21, 0
      %s24 = sadd.s32 %s23, 1
      %s25 = scalar_select %p22, %s23, %s24
      %p28 = pneg %p22
      %p29 = scmp.eq.s32.totalorder %s13, 1
      %p30 = por %p28, %p29
      %p31 = scmp.ne.s32.totalorder %s23, %s26
      %p32 = scmp.eq.s32.totalorder %s13, 0
      %p33 = por %p31, %p32
      %p34 = scmp.ne.s32.totalorder %s23, %s26
      %p35 = scmp.eq.s32.totalorder %s18, 1
      %p36 = por %p34, %p35
      %p37 = scmp.ne.s32.totalorder %s26, %s27
      %p38 = scmp.eq.s32.totalorder %s18, 0
      %p39 = por %p37, %p38
      %p40 = scmp.ne.s32.totalorder %s26, %s27
      %p41 = scmp.eq.s32.totalorder %s19, 1
      %p42 = por %p40, %p41
      %p44 = scmp.ne.s32.totalorder %s27, %s43
      %p45 = scmp.eq.s32.totalorder %s19, 0
      %p46 = por %p44, %p45
      %s47 = ssub.s32 %s13, %s20
      %p48 = scmp.eq.s32.totalorder %s47, 0
      %s50 = sadd.s32 %s49, 1
      %s51 = scalar_select %p48, %s49, %s50
      %p54 = pneg %p48
      %p55 = scmp.eq.s32.totalorder %s13, 1
      %p56 = por %p54, %p55
      %p57 = scmp.ne.s32.totalorder %s49, %s52
      %p58 = scmp.eq.s32.totalorder %s13, 0
      %p59 = por %p57, %p58
      %p60 = scmp.ne.s32.totalorder %s49, %s52
      %p61 = scmp.eq.s32.totalorder %s18, 1
      %p62 = por %p60, %p61
      %p63 = scmp.ne.s32.totalorder %s52, %s53
      %p64 = scmp.eq.s32.totalorder %s18, 0
      %p65 = por %p63, %p64
      %p66 = scmp.ne.s32.totalorder %s52, %s53
      %p67 = scmp.eq.s32.totalorder %s19, 1
      %p68 = por %p66, %p67
      %p70 = scmp.ne.s32.totalorder %s53, %s69
      %p71 = scmp.eq.s32.totalorder %s19, 0
      %p72 = por %p70, %p71
      %s73 = ssub.s32 %s13, %s20
      %p74 = scmp.eq.s32.totalorder %s73, 0
      %s76 = sadd.s32 %s75, 1
      %s77 = scalar_select %p74, %s75, %s76
      %p80 = pneg %p74
      %p81 = scmp.eq.s32.totalorder %s13, 1
      %p82 = por %p80, %p81
      %p83 = scmp.ne.s32.totalorder %s75, %s78
      %p84 = scmp.eq.s32.totalorder %s13, 0
      %p85 = por %p83, %p84
      %p86 = scmp.ne.s32.totalorder %s75, %s78
      %p87 = scmp.eq.s32.totalorder %s18, 1
      %p88 = por %p86, %p87
      %p89 = scmp.ne.s32.totalorder %s78, %s79
      %p90 = scmp.eq.s32.totalorder %s18, 0
      %p91 = por %p89, %p90
      %p92 = scmp.ne.s32.totalorder %s78, %s79
      %p93 = scmp.eq.s32.totalorder %s19, 1
      %p94 = por %p92, %p93
      %p96 = scmp.ne.s32.totalorder %s79, %s95
      %p97 = scmp.eq.s32.totalorder %s19, 0
      %p98 = por %p96, %p97
      %s99 = ssub.s32 %s13, %s20
      %p100 = scmp.eq.s32.totalorder %s99, 0
      %s102 = sadd.s32 %s101, 1
      %s103 = scalar_select %p100, %s101, %s102
      %p106 = pneg %p100
      %p107 = scmp.eq.s32.totalorder %s13, 1
      %p108 = por %p106, %p107
      %p109 = scmp.ne.s32.totalorder %s101, %s104
      %p110 = scmp.eq.s32.totalorder %s13, 0
      %p111 = por %p109, %p110
      %p112 = scmp.ne.s32.totalorder %s101, %s104
      %p113 = scmp.eq.s32.totalorder %s18, 1
      %p114 = por %p112, %p113
      %p115 = scmp.ne.s32.totalorder %s104, %s105
      %p116 = scmp.eq.s32.totalorder %s18, 0
      %p117 = por %p115, %p116
      %p118 = scmp.ne.s32.totalorder %s104, %s105
      %p119 = scmp.eq.s32.totalorder %s19, 1
      %p120 = por %p118, %p119
      %p122 = scmp.ne.s32.totalorder %s105, %s121
      %p123 = scmp.eq.s32.totalorder %s19, 0
      %p124 = por %p122, %p123
      %s125 = ssub.s32 %s13, %s20
      %p126 = scmp.eq.s32.totalorder %s125, 0
      %s128 = sadd.s32 %s127, 1
      %s129 = scalar_select %p126, %s127, %s128
      %p132 = pneg %p126
      %p133 = scmp.eq.s32.totalorder %s13, 1
      %p134 = por %p132, %p133
      %p135 = scmp.ne.s32.totalorder %s127, %s130
      %p136 = scmp.eq.s32.totalorder %s13, 0
      %p137 = por %p135, %p136
      %p138 = scmp.ne.s32.totalorder %s127, %s130
      %p139 = scmp.eq.s32.totalorder %s18, 1
      %p140 = por %p138, %p139
      %p141 = scmp.ne.s32.totalorder %s130, %s131
      %p142 = scmp.eq.s32.totalorder %s18, 0
      %p143 = por %p141, %p142
      %p144 = scmp.ne.s32.totalorder %s130, %s131
      %p145 = scmp.eq.s32.totalorder %s19, 1
      %p146 = por %p144, %p145
      %p148 = scmp.ne.s32.totalorder %s131, %s147
      %p149 = scmp.eq.s32.totalorder %s19, 0
      %p150 = por %p148, %p149
      %s151 = ssub.s32 %s13, %s20
      %p152 = scmp.eq.s32.totalorder %s151, 0
      %s154 = sadd.s32 %s153, 1
      %s155 = scalar_select %p152, %s153, %s154
      %p158 = pneg %p152
      %p159 = scmp.eq.s32.totalorder %s13, 1
      %p160 = por %p158, %p159
      %p161 = scmp.ne.s32.totalorder %s153, %s156
      %p162 = scmp.eq.s32.totalorder %s13, 0
      %p163 = por %p161, %p162
      %p164 = scmp.ne.s32.totalorder %s153, %s156
      %p165 = scmp.eq.s32.totalorder %s18, 1
      %p166 = por %p164, %p165
      %p167 = scmp.ne.s32.totalorder %s156, %s157
      %p168 = scmp.eq.s32.totalorder %s18, 0
      %p169 = por %p167, %p168
      %p170 = scmp.ne.s32.totalorder %s156, %s157
      %p171 = scmp.eq.s32.totalorder %s19, 1
      %p172 = por %p170, %p171
      %p174 = scmp.ne.s32.totalorder %s157, %s173
      %p175 = scmp.eq.s32.totalorder %s19, 0
      %p176 = por %p174, %p175
      %s177 = ssub.s32 %s13, %s20
      %p178 = scmp.eq.s32.totalorder %s177, 0
      %s180 = sadd.s32 %s179, 1
      %s181 = scalar_select %p178, %s179, %s180
      %p184 = pneg %p178
      %p185 = scmp.eq.s32.totalorder %s13, 1
      %p186 = por %p184, %p185
      %p187 = scmp.ne.s32.totalorder %s179, %s182
      %p188 = scmp.eq.s32.totalorder %s13, 0
      %p189 = por %p187, %p188
      %p190 = scmp.ne.s32.totalorder %s179, %s182
      %p191 = scmp.eq.s32.totalorder %s18, 1
      %p192 = por %p190, %p191
      %p193 = scmp.ne.s32.totalorder %s182, %s183
      %p194 = scmp.eq.s32.totalorder %s18, 0
      %p195 = por %p193, %p194
      %p196 = scmp.ne.s32.totalorder %s182, %s183
      %p197 = scmp.eq.s32.totalorder %s19, 1
      %p198 = por %p196, %p197
      %p200 = scmp.ne.s32.totalorder %s183, %s199
      %p201 = scmp.eq.s32.totalorder %s19, 0
      %p202 = por %p200, %p201
      %p203 = scmp.le.s32.totalorder 1, %s13
      %p204 = scmp.lt.s32.totalorder %s13, 3
      %p205 = pnand %p203, %p204
      %p206 = pneg %p205
      // Predicated region
      $region9: #{fno_block_forward.2} parent=5 // pred_check
        _
      $region10: #{fno_block_forward.2} parent=5 // pred_check_branch
        %208 = sbr.rel (%p205) target = $region12
      $region11: #{fno_block_forward.2} parent=5 // pred_region
        %s209 = ssub.s32 %s13, 1
      $region12: #{fno_block_forward.2} parent=5 // pred_fallthru
        _
      %p210 = scmp.lt.s32.totalorder %s13, 2
      // Predicated region
      $region13: #{fno_block_forward.2} parent=5 // pred_check
        %p211 = pneg %p210
      $region14: #{fno_block_forward.2} parent=5 // pred_check_branch
        %213 = sbr.rel (%p211) target = $region16
      $region15: #{fno_block_forward.2} parent=5 // pred_region
        // Predicated region
        $region17: #{fno_block_forward.2} parent=15 // pred_check
          %p214 = pneg %p33
        $region18: #{fno_block_forward.2} parent=15 // pred_check_branch
          %216 = sbr.rel (%p214) target = $region20
        $region19: #{fno_block_forward.2} parent=15 // pred_region
          %s217 = sand.u32 %s23, 1
          %s218 = sand.u32 %s23, 1
          %s219 = smul.addr %s218, 16
          %s220 = scalar_lea.vmem [#allocation2], %s219
          %s221 = smul.addr %s13, 8
          %s222 = scalar_lea.vmem %s0, %s221
          // Predicated region
          $region21: #{fno_block_forward.2} parent=19 // pred_check
            _
          $region22: #{fno_block_forward.2} parent=19 // pred_check_branch
            %224 = sbr.rel (0) target = $region24
          $region23: #{fno_block_forward.2} parent=19 // pred_region
            // Predicated region
            $region25: #{fno_block_forward.2} parent=23 // pred_check
              _
            $region26: #{fno_block_forward.2} parent=23 // pred_check_branch
              %226 = sbr.rel (0) target = $region28
            $region27: #{fno_block_forward.2} parent=23 // pred_region
              // Predicated region
              $region40: #{fno_block_forward.2} parent=27 // pred_check
                _
              $region41: #{fno_block_forward.2} parent=27 // pred_check_branch
                %244 = sbr.rel (0) target = $region43
              $region42: #{fno_block_forward.2} parent=27 // pred_region
                loop: start=0, step=1, limit=1
                $region44: #{fno_block_forward.2} parent=42 // loop_pre_header
                  _
                $region45: #{fno_block_forward.2} parent=42 // loop_header
                  %s246 = sphi 0, %s250
                  %p247 = scmp.ge.s32.totalorder %s246, 1
                  %s251 = sphi %s222, %s222
                  %s252 = sphi %s220, %s220
                $region46: #{fno_block_forward.2} parent=42 // loop_header_branch
                  %249 = sbr.rel (%p247) target = $region50
                $region47: #{fno_block_forward.2} parent=42 // loop_body
                  %v253 = vld [vmem:[%s251] sm:$0xff]
                  %254 = vst [vmem:[%s252] sm:$0xff] %v253
                  %v255 = vld [vmem:[%s251 + $0x10] sm:$0xff]
                  %256 = vst [vmem:[%s252 + $0x8] sm:$0xff] %v255
                $region48: #{fno_block_forward.2} parent=42 // loop_footer
                  %s250 = sadd.s32 1, %s246
                $region49: #{fno_block_forward.2} parent=42 // loop_footer_branch
                  %245 = sbr.rel target = $region45
                $region50: #{fno_block_forward.2} parent=42 // loop_exit
                  _
              $region43: #{fno_block_forward.2} parent=27 // pred_fallthru
                _
              // Predicated region
              $region51: #{fno_block_forward.2} parent=27 // pred_check
                _
              $region52: #{fno_block_forward.2} parent=27 // pred_check_branch
                %258 = sbr.rel target = $region54
              $region53: #{fno_block_forward.2} parent=27 // pred_region
                _
              $region54: #{fno_block_forward.2} parent=27 // pred_fallthru
                _
            $region28: #{fno_block_forward.2} parent=23 // pred_fallthru
              _
            // Predicated region
            $region29: #{fno_block_forward.2} parent=23 // pred_check
              _
            $region30: #{fno_block_forward.2} parent=23 // pred_check_branch
              %228 = sbr.rel target = $region32
            $region31: #{fno_block_forward.2} parent=23 // pred_region
              %s230 = ssub.s32 256, 1
              loop: start=0, step=1, limit=1
              $region33: #{fno_block_forward.2} parent=31 // loop_pre_header
                _
              $region34: #{fno_block_forward.2} parent=31 // loop_header
                %s232 = sphi 0, %s236
                %p233 = scmp.ge.s32.totalorder %s232, 1
                %s237 = sphi %s222, %s222
                %s238 = sphi %s220, %s220
              $region35: #{fno_block_forward.2} parent=31 // loop_header_branch
                %235 = sbr.rel (%p233) target = $region39
              $region36: #{fno_block_forward.2} parent=31 // loop_body
                %v239 = vld [vmem:[%s237] sm:%s230]
                %240 = vst [vmem:[%s238] sm:%s230] %v239
                %v241 = vld [vmem:[%s237 + $0x10] sm:%s230]
                %242 = vst [vmem:[%s238 + $0x8] sm:%s230] %v241
              $region37: #{fno_block_forward.2} parent=31 // loop_footer
                %s236 = sadd.s32 1, %s232
              $region38: #{fno_block_forward.2} parent=31 // loop_footer_branch
                %231 = sbr.rel target = $region34
              $region39: #{fno_block_forward.2} parent=31 // loop_exit
                _
            $region32: #{fno_block_forward.2} parent=23 // pred_fallthru
              _
          $region24: #{fno_block_forward.2} parent=19 // pred_fallthru
            _
          %259 = vnop
        $region20: #{fno_block_forward.2} parent=15 // pred_fallthru
          _
        // Predicated region
        $region55: #{fno_block_forward.2} parent=15 // pred_check
          %p260 = pneg %p59
        $region56: #{fno_block_forward.2} parent=15 // pred_check_branch
          %262 = sbr.rel (%p260) target = $region58
        $region57: #{fno_block_forward.2} parent=15 // pred_region
          %s263 = sand.u32 %s49, 1
          %s264 = sand.u32 %s49, 1
          %s265 = smul.addr %s264, 16
          %s266 = scalar_lea.vmem [#allocation3], %s265
          %s267 = smul.addr %s13, 8
          %s268 = scalar_lea.vmem %s1, %s267
          // Predicated region
          $region59: #{fno_block_forward.2} parent=57 // pred_check
            _
          $region60: #{fno_block_forward.2} parent=57 // pred_check_branch
            %270 = sbr.rel (0) target = $region62
          $region61: #{fno_block_forward.2} parent=57 // pred_region
            // Predicated region
            $region63: #{fno_block_forward.2} parent=61 // pred_check
              _
            $region64: #{fno_block_forward.2} parent=61 // pred_check_branch
              %272 = sbr.rel (0) target = $region66
            $region65: #{fno_block_forward.2} parent=61 // pred_region
              // Predicated region
              $region78: #{fno_block_forward.2} parent=65 // pred_check
                _
              $region79: #{fno_block_forward.2} parent=65 // pred_check_branch
                %290 = sbr.rel (0) target = $region81
              $region80: #{fno_block_forward.2} parent=65 // pred_region
                loop: start=0, step=1, limit=1
                $region82: #{fno_block_forward.2} parent=80 // loop_pre_header
                  _
                $region83: #{fno_block_forward.2} parent=80 // loop_header
                  %s292 = sphi 0, %s296
                  %p293 = scmp.ge.s32.totalorder %s292, 1
                  %s297 = sphi %s268, %s268
                  %s298 = sphi %s266, %s266
                $region84: #{fno_block_forward.2} parent=80 // loop_header_branch
                  %295 = sbr.rel (%p293) target = $region88
                $region85: #{fno_block_forward.2} parent=80 // loop_body
                  %v299 = vld [vmem:[%s297] sm:$0xff]
                  %300 = vst [vmem:[%s298] sm:$0xff] %v299
                  %v301 = vld [vmem:[%s297 + $0x10] sm:$0xff]
                  %302 = vst [vmem:[%s298 + $0x8] sm:$0xff] %v301
                $region86: #{fno_block_forward.2} parent=80 // loop_footer
                  %s296 = sadd.s32 1, %s292
                $region87: #{fno_block_forward.2} parent=80 // loop_footer_branch
                  %291 = sbr.rel target = $region83
                $region88: #{fno_block_forward.2} parent=80 // loop_exit
                  _
              $region81: #{fno_block_forward.2} parent=65 // pred_fallthru
                _
              // Predicated region
              $region89: #{fno_block_forward.2} parent=65 // pred_check
                _
              $region90: #{fno_block_forward.2} parent=65 // pred_check_branch
                %304 = sbr.rel target = $region92
              $region91: #{fno_block_forward.2} parent=65 // pred_region
                _
              $region92: #{fno_block_forward.2} parent=65 // pred_fallthru
                _
            $region66: #{fno_block_forward.2} parent=61 // pred_fallthru
              _
            // Predicated region
            $region67: #{fno_block_forward.2} parent=61 // pred_check
              _
            $region68: #{fno_block_forward.2} parent=61 // pred_check_branch
              %274 = sbr.rel target = $region70
            $region69: #{fno_block_forward.2} parent=61 // pred_region
              %s276 = ssub.s32 256, 1
              loop: start=0, step=1, limit=1
              $region71: #{fno_block_forward.2} parent=69 // loop_pre_header
                _
              $region72: #{fno_block_forward.2} parent=69 // loop_header
                %s278 = sphi 0, %s282
                %p279 = scmp.ge.s32.totalorder %s278, 1
                %s283 = sphi %s268, %s268
                %s284 = sphi %s266, %s266
              $region73: #{fno_block_forward.2} parent=69 // loop_header_branch
                %281 = sbr.rel (%p279) target = $region77
              $region74: #{fno_block_forward.2} parent=69 // loop_body
                %v285 = vld [vmem:[%s283] sm:%s276]
                %286 = vst [vmem:[%s284] sm:%s276] %v285
                %v287 = vld [vmem:[%s283 + $0x10] sm:%s276]
                %288 = vst [vmem:[%s284 + $0x8] sm:%s276] %v287
              $region75: #{fno_block_forward.2} parent=69 // loop_footer
                %s282 = sadd.s32 1, %s278
              $region76: #{fno_block_forward.2} parent=69 // loop_footer_branch
                %277 = sbr.rel target = $region72
              $region77: #{fno_block_forward.2} parent=69 // loop_exit
                _
            $region70: #{fno_block_forward.2} parent=61 // pred_fallthru
              _
          $region62: #{fno_block_forward.2} parent=57 // pred_fallthru
            _
          %305 = vnop
        $region58: #{fno_block_forward.2} parent=15 // pred_fallthru
          _
        // Predicated region
        $region93: #{fno_block_forward.2} parent=15 // pred_check
          %p306 = pneg %p85
        $region94: #{fno_block_forward.2} parent=15 // pred_check_branch
          %308 = sbr.rel (%p306) target = $region96
        $region95: #{fno_block_forward.2} parent=15 // pred_region
          %s309 = sand.u32 %s75, 1
          %s310 = sand.u32 %s75, 1
          %s311 = smul.addr %s310, 64
          %s312 = scalar_lea.vmem [#allocation4], %s311
          %s313 = smul.addr %s13, 8
          %s314 = scalar_lea.vmem %s2, %s313
          // Predicated region
          $region97: #{fno_block_forward.2} parent=95 // pred_check
            _
          $region98: #{fno_block_forward.2} parent=95 // pred_check_branch
            %316 = sbr.rel (0) target = $region100
          $region99: #{fno_block_forward.2} parent=95 // pred_region
            // Predicated region
            $region101: #{fno_block_forward.2} parent=99 // pred_check
              _
            $region102: #{fno_block_forward.2} parent=99 // pred_check_branch
              %318 = sbr.rel (0) target = $region104
            $region103: #{fno_block_forward.2} parent=99 // pred_region
              // Predicated region
              $region116: #{fno_block_forward.2} parent=103 // pred_check
                _
              $region117: #{fno_block_forward.2} parent=103 // pred_check_branch
                %348 = sbr.rel (0) target = $region119
              $region118: #{fno_block_forward.2} parent=103 // pred_region
                loop: start=0, step=1, limit=1
                $region120: #{fno_block_forward.2} parent=118 // loop_pre_header
                  _
                $region121: #{fno_block_forward.2} parent=118 // loop_header
                  %s350 = sphi 0, %s354
                  %p351 = scmp.ge.s32.totalorder %s350, 1
                  %s355 = sphi %s314, %s314
                  %s356 = sphi %s312, %s312
                $region122: #{fno_block_forward.2} parent=118 // loop_header_branch
                  %353 = sbr.rel (%p351) target = $region126
                $region123: #{fno_block_forward.2} parent=118 // loop_body
                  %v357 = vld [vmem:[%s355] sm:$0xff]
                  %358 = vst [vmem:[%s356] sm:$0xff] %v357
                  %v359 = vld [vmem:[%s355 + $0x10] sm:$0xff]
                  %360 = vst [vmem:[%s356 + $0x8] sm:$0xff] %v359
                  %v361 = vld [vmem:[%s355 + $0x20] sm:$0xff]
                  %362 = vst [vmem:[%s356 + $0x10] sm:$0xff] %v361
                  %v363 = vld [vmem:[%s355 + $0x30] sm:$0xff]
                  %364 = vst [vmem:[%s356 + $0x18] sm:$0xff] %v363
                  %v365 = vld [vmem:[%s355 + $0x40] sm:$0xff]
                  %366 = vst [vmem:[%s356 + $0x20] sm:$0xff] %v365
                  %v367 = vld [vmem:[%s355 + $0x50] sm:$0xff]
                  %368 = vst [vmem:[%s356 + $0x28] sm:$0xff] %v367
                  %v369 = vld [vmem:[%s355 + $0x60] sm:$0xff]
                  %370 = vst [vmem:[%s356 + $0x30] sm:$0xff] %v369
                  %v371 = vld [vmem:[%s355 + $0x70] sm:$0xff]
                  %372 = vst [vmem:[%s356 + $0x38] sm:$0xff] %v371
                $region124: #{fno_block_forward.2} parent=118 // loop_footer
                  %s354 = sadd.s32 1, %s350
                $region125: #{fno_block_forward.2} parent=118 // loop_footer_branch
                  %349 = sbr.rel target = $region121
                $region126: #{fno_block_forward.2} parent=118 // loop_exit
                  _
              $region119: #{fno_block_forward.2} parent=103 // pred_fallthru
                _
              // Predicated region
              $region127: #{fno_block_forward.2} parent=103 // pred_check
                _
              $region128: #{fno_block_forward.2} parent=103 // pred_check_branch
                %374 = sbr.rel target = $region130
              $region129: #{fno_block_forward.2} parent=103 // pred_region
                _
              $region130: #{fno_block_forward.2} parent=103 // pred_fallthru
                _
            $region104: #{fno_block_forward.2} parent=99 // pred_fallthru
              _
            // Predicated region
            $region105: #{fno_block_forward.2} parent=99 // pred_check
              _
            $region106: #{fno_block_forward.2} parent=99 // pred_check_branch
              %320 = sbr.rel target = $region108
            $region107: #{fno_block_forward.2} parent=99 // pred_region
              %s322 = ssub.s32 256, 1
              loop: start=0, step=1, limit=1
              $region109: #{fno_block_forward.2} parent=107 // loop_pre_header
                _
              $region110: #{fno_block_forward.2} parent=107 // loop_header
                %s324 = sphi 0, %s328
                %p325 = scmp.ge.s32.totalorder %s324, 1
                %s329 = sphi %s314, %s314
                %s330 = sphi %s312, %s312
              $region111: #{fno_block_forward.2} parent=107 // loop_header_branch
                %327 = sbr.rel (%p325) target = $region115
              $region112: #{fno_block_forward.2} parent=107 // loop_body
                %v331 = vld [vmem:[%s329] sm:%s322]
                %332 = vst [vmem:[%s330] sm:%s322] %v331
                %v333 = vld [vmem:[%s329 + $0x10] sm:%s322]
                %334 = vst [vmem:[%s330 + $0x8] sm:%s322] %v333
                %v335 = vld [vmem:[%s329 + $0x20] sm:%s322]
                %336 = vst [vmem:[%s330 + $0x10] sm:%s322] %v335
                %v337 = vld [vmem:[%s329 + $0x30] sm:%s322]
                %338 = vst [vmem:[%s330 + $0x18] sm:%s322] %v337
                %v339 = vld [vmem:[%s329 + $0x40] sm:%s322]
                %340 = vst [vmem:[%s330 + $0x20] sm:%s322] %v339
                %v341 = vld [vmem:[%s329 + $0x50] sm:%s322]
                %342 = vst [vmem:[%s330 + $0x28] sm:%s322] %v341
                %v343 = vld [vmem:[%s329 + $0x60] sm:%s322]
                %344 = vst [vmem:[%s330 + $0x30] sm:%s322] %v343
                %v345 = vld [vmem:[%s329 + $0x70] sm:%s322]
                %346 = vst [vmem:[%s330 + $0x38] sm:%s322] %v345
              $region113: #{fno_block_forward.2} parent=107 // loop_footer
                %s328 = sadd.s32 1, %s324
              $region114: #{fno_block_forward.2} parent=107 // loop_footer_branch
                %323 = sbr.rel target = $region110
              $region115: #{fno_block_forward.2} parent=107 // loop_exit
                _
            $region108: #{fno_block_forward.2} parent=99 // pred_fallthru
              _
          $region100: #{fno_block_forward.2} parent=95 // pred_fallthru
            _
          %375 = vnop
        $region96: #{fno_block_forward.2} parent=15 // pred_fallthru
          _
        // Predicated region
        $region131: #{fno_block_forward.2} parent=15 // pred_check
          %p376 = pneg %p111
        $region132: #{fno_block_forward.2} parent=15 // pred_check_branch
          %378 = sbr.rel (%p376) target = $region134
        $region133: #{fno_block_forward.2} parent=15 // pred_region
          %s379 = sand.u32 %s101, 1
          %s380 = sand.u32 %s101, 1
          %s381 = smul.addr %s380, 64
          %s382 = scalar_lea.vmem [#allocation5], %s381
          %s383 = smul.addr %s13, 8
          %s384 = scalar_lea.vmem %s3, %s383
          // Predicated region
          $region135: #{fno_block_forward.2} parent=133 // pred_check
            _
          $region136: #{fno_block_forward.2} parent=133 // pred_check_branch
            %386 = sbr.rel (0) target = $region138
          $region137: #{fno_block_forward.2} parent=133 // pred_region
            // Predicated region
            $region139: #{fno_block_forward.2} parent=137 // pred_check
              _
            $region140: #{fno_block_forward.2} parent=137 // pred_check_branch
              %388 = sbr.rel (0) target = $region142
            $region141: #{fno_block_forward.2} parent=137 // pred_region
              // Predicated region
              $region154: #{fno_block_forward.2} parent=141 // pred_check
                _
              $region155: #{fno_block_forward.2} parent=141 // pred_check_branch
                %418 = sbr.rel (0) target = $region157
              $region156: #{fno_block_forward.2} parent=141 // pred_region
                loop: start=0, step=1, limit=1
                $region158: #{fno_block_forward.2} parent=156 // loop_pre_header
                  _
                $region159: #{fno_block_forward.2} parent=156 // loop_header
                  %s420 = sphi 0, %s424
                  %p421 = scmp.ge.s32.totalorder %s420, 1
                  %s425 = sphi %s384, %s384
                  %s426 = sphi %s382, %s382
                $region160: #{fno_block_forward.2} parent=156 // loop_header_branch
                  %423 = sbr.rel (%p421) target = $region164
                $region161: #{fno_block_forward.2} parent=156 // loop_body
                  %v427 = vld [vmem:[%s425] sm:$0xff]
                  %428 = vst [vmem:[%s426] sm:$0xff] %v427
                  %v429 = vld [vmem:[%s425 + $0x10] sm:$0xff]
                  %430 = vst [vmem:[%s426 + $0x8] sm:$0xff] %v429
                  %v431 = vld [vmem:[%s425 + $0x20] sm:$0xff]
                  %432 = vst [vmem:[%s426 + $0x10] sm:$0xff] %v431
                  %v433 = vld [vmem:[%s425 + $0x30] sm:$0xff]
                  %434 = vst [vmem:[%s426 + $0x18] sm:$0xff] %v433
                  %v435 = vld [vmem:[%s425 + $0x40] sm:$0xff]
                  %436 = vst [vmem:[%s426 + $0x20] sm:$0xff] %v435
                  %v437 = vld [vmem:[%s425 + $0x50] sm:$0xff]
                  %438 = vst [vmem:[%s426 + $0x28] sm:$0xff] %v437
                  %v439 = vld [vmem:[%s425 + $0x60] sm:$0xff]
                  %440 = vst [vmem:[%s426 + $0x30] sm:$0xff] %v439
                  %v441 = vld [vmem:[%s425 + $0x70] sm:$0xff]
                  %442 = vst [vmem:[%s426 + $0x38] sm:$0xff] %v441
                $region162: #{fno_block_forward.2} parent=156 // loop_footer
                  %s424 = sadd.s32 1, %s420
                $region163: #{fno_block_forward.2} parent=156 // loop_footer_branch
                  %419 = sbr.rel target = $region159
                $region164: #{fno_block_forward.2} parent=156 // loop_exit
                  _
              $region157: #{fno_block_forward.2} parent=141 // pred_fallthru
                _
              // Predicated region
              $region165: #{fno_block_forward.2} parent=141 // pred_check
                _
              $region166: #{fno_block_forward.2} parent=141 // pred_check_branch
                %444 = sbr.rel target = $region168
              $region167: #{fno_block_forward.2} parent=141 // pred_region
                _
              $region168: #{fno_block_forward.2} parent=141 // pred_fallthru
                _
            $region142: #{fno_block_forward.2} parent=137 // pred_fallthru
              _
            // Predicated region
            $region143: #{fno_block_forward.2} parent=137 // pred_check
              _
            $region144: #{fno_block_forward.2} parent=137 // pred_check_branch
              %390 = sbr.rel target = $region146
            $region145: #{fno_block_forward.2} parent=137 // pred_region
              %s392 = ssub.s32 256, 1
              loop: start=0, step=1, limit=1
              $region147: #{fno_block_forward.2} parent=145 // loop_pre_header
                _
              $region148: #{fno_block_forward.2} parent=145 // loop_header
                %s394 = sphi 0, %s398
                %p395 = scmp.ge.s32.totalorder %s394, 1
                %s399 = sphi %s384, %s384
                %s400 = sphi %s382, %s382
              $region149: #{fno_block_forward.2} parent=145 // loop_header_branch
                %397 = sbr.rel (%p395) target = $region153
              $region150: #{fno_block_forward.2} parent=145 // loop_body
                %v401 = vld [vmem:[%s399] sm:%s392]
                %402 = vst [vmem:[%s400] sm:%s392] %v401
                %v403 = vld [vmem:[%s399 + $0x10] sm:%s392]
                %404 = vst [vmem:[%s400 + $0x8] sm:%s392] %v403
                %v405 = vld [vmem:[%s399 + $0x20] sm:%s392]
                %406 = vst [vmem:[%s400 + $0x10] sm:%s392] %v405
                %v407 = vld [vmem:[%s399 + $0x30] sm:%s392]
                %408 = vst [vmem:[%s400 + $0x18] sm:%s392] %v407
                %v409 = vld [vmem:[%s399 + $0x40] sm:%s392]
                %410 = vst [vmem:[%s400 + $0x20] sm:%s392] %v409
                %v411 = vld [vmem:[%s399 + $0x50] sm:%s392]
                %412 = vst [vmem:[%s400 + $0x28] sm:%s392] %v411
                %v413 = vld [vmem:[%s399 + $0x60] sm:%s392]
                %414 = vst [vmem:[%s400 + $0x30] sm:%s392] %v413
                %v415 = vld [vmem:[%s399 + $0x70] sm:%s392]
                %416 = vst [vmem:[%s400 + $0x38] sm:%s392] %v415
              $region151: #{fno_block_forward.2} parent=145 // loop_footer
                %s398 = sadd.s32 1, %s394
              $region152: #{fno_block_forward.2} parent=145 // loop_footer_branch
                %393 = sbr.rel target = $region148
              $region153: #{fno_block_forward.2} parent=145 // loop_exit
                _
            $region146: #{fno_block_forward.2} parent=137 // pred_fallthru
              _
          $region138: #{fno_block_forward.2} parent=133 // pred_fallthru
            _
          %445 = vnop
        $region134: #{fno_block_forward.2} parent=15 // pred_fallthru
          _
        // Predicated region
        $region169: #{fno_block_forward.2} parent=15 // pred_check
          %p446 = pneg %p137
        $region170: #{fno_block_forward.2} parent=15 // pred_check_branch
          %448 = sbr.rel (%p446) target = $region172
        $region171: #{fno_block_forward.2} parent=15 // pred_region
          %s449 = sand.u32 %s127, 1
          %s450 = sand.u32 %s127, 1
          %s451 = smul.addr %s450, 64
          %s452 = scalar_lea.vmem [#allocation6], %s451
          %s453 = smul.addr %s13, 8
          %s454 = scalar_lea.vmem %s4, %s453
          // Predicated region
          $region173: #{fno_block_forward.2} parent=171 // pred_check
            _
          $region174: #{fno_block_forward.2} parent=171 // pred_check_branch
            %456 = sbr.rel (0) target = $region176
          $region175: #{fno_block_forward.2} parent=171 // pred_region
            // Predicated region
            $region177: #{fno_block_forward.2} parent=175 // pred_check
              _
            $region178: #{fno_block_forward.2} parent=175 // pred_check_branch
              %458 = sbr.rel (0) target = $region180
            $region179: #{fno_block_forward.2} parent=175 // pred_region
              // Predicated region
              $region192: #{fno_block_forward.2} parent=179 // pred_check
                _
              $region193: #{fno_block_forward.2} parent=179 // pred_check_branch
                %488 = sbr.rel (0) target = $region195
              $region194: #{fno_block_forward.2} parent=179 // pred_region
                loop: start=0, step=1, limit=1
                $region196: #{fno_block_forward.2} parent=194 // loop_pre_header
                  _
                $region197: #{fno_block_forward.2} parent=194 // loop_header
                  %s490 = sphi 0, %s494
                  %p491 = scmp.ge.s32.totalorder %s490, 1
                  %s495 = sphi %s454, %s454
                  %s496 = sphi %s452, %s452
                $region198: #{fno_block_forward.2} parent=194 // loop_header_branch
                  %493 = sbr.rel (%p491) target = $region202
                $region199: #{fno_block_forward.2} parent=194 // loop_body
                  %v497 = vld [vmem:[%s495] sm:$0xff]
                  %498 = vst [vmem:[%s496] sm:$0xff] %v497
                  %v499 = vld [vmem:[%s495 + $0x10] sm:$0xff]
                  %500 = vst [vmem:[%s496 + $0x8] sm:$0xff] %v499
                  %v501 = vld [vmem:[%s495 + $0x20] sm:$0xff]
                  %502 = vst [vmem:[%s496 + $0x10] sm:$0xff] %v501
                  %v503 = vld [vmem:[%s495 + $0x30] sm:$0xff]
                  %504 = vst [vmem:[%s496 + $0x18] sm:$0xff] %v503
                  %v505 = vld [vmem:[%s495 + $0x40] sm:$0xff]
                  %506 = vst [vmem:[%s496 + $0x20] sm:$0xff] %v505
                  %v507 = vld [vmem:[%s495 + $0x50] sm:$0xff]
                  %508 = vst [vmem:[%s496 + $0x28] sm:$0xff] %v507
                  %v509 = vld [vmem:[%s495 + $0x60] sm:$0xff]
                  %510 = vst [vmem:[%s496 + $0x30] sm:$0xff] %v509
                  %v511 = vld [vmem:[%s495 + $0x70] sm:$0xff]
                  %512 = vst [vmem:[%s496 + $0x38] sm:$0xff] %v511
                $region200: #{fno_block_forward.2} parent=194 // loop_footer
                  %s494 = sadd.s32 1, %s490
                $region201: #{fno_block_forward.2} parent=194 // loop_footer_branch
                  %489 = sbr.rel target = $region197
                $region202: #{fno_block_forward.2} parent=194 // loop_exit
                  _
              $region195: #{fno_block_forward.2} parent=179 // pred_fallthru
                _
              // Predicated region
              $region203: #{fno_block_forward.2} parent=179 // pred_check
                _
              $region204: #{fno_block_forward.2} parent=179 // pred_check_branch
                %514 = sbr.rel target = $region206
              $region205: #{fno_block_forward.2} parent=179 // pred_region
                _
              $region206: #{fno_block_forward.2} parent=179 // pred_fallthru
                _
            $region180: #{fno_block_forward.2} parent=175 // pred_fallthru
              _
            // Predicated region
            $region181: #{fno_block_forward.2} parent=175 // pred_check
              _
            $region182: #{fno_block_forward.2} parent=175 // pred_check_branch
              %460 = sbr.rel target = $region184
            $region183: #{fno_block_forward.2} parent=175 // pred_region
              %s462 = ssub.s32 256, 1
              loop: start=0, step=1, limit=1
              $region185: #{fno_block_forward.2} parent=183 // loop_pre_header
                _
              $region186: #{fno_block_forward.2} parent=183 // loop_header
                %s464 = sphi 0, %s468
                %p465 = scmp.ge.s32.totalorder %s464, 1
                %s469 = sphi %s454, %s454
                %s470 = sphi %s452, %s452
              $region187: #{fno_block_forward.2} parent=183 // loop_header_branch
                %467 = sbr.rel (%p465) target = $region191
              $region188: #{fno_block_forward.2} parent=183 // loop_body
                %v471 = vld [vmem:[%s469] sm:%s462]
                %472 = vst [vmem:[%s470] sm:%s462] %v471
                %v473 = vld [vmem:[%s469 + $0x10] sm:%s462]
                %474 = vst [vmem:[%s470 + $0x8] sm:%s462] %v473
                %v475 = vld [vmem:[%s469 + $0x20] sm:%s462]
                %476 = vst [vmem:[%s470 + $0x10] sm:%s462] %v475
                %v477 = vld [vmem:[%s469 + $0x30] sm:%s462]
                %478 = vst [vmem:[%s470 + $0x18] sm:%s462] %v477
                %v479 = vld [vmem:[%s469 + $0x40] sm:%s462]
                %480 = vst [vmem:[%s470 + $0x20] sm:%s462] %v479
                %v481 = vld [vmem:[%s469 + $0x50] sm:%s462]
                %482 = vst [vmem:[%s470 + $0x28] sm:%s462] %v481
                %v483 = vld [vmem:[%s469 + $0x60] sm:%s462]
                %484 = vst [vmem:[%s470 + $0x30] sm:%s462] %v483
                %v485 = vld [vmem:[%s469 + $0x70] sm:%s462]
                %486 = vst [vmem:[%s470 + $0x38] sm:%s462] %v485
              $region189: #{fno_block_forward.2} parent=183 // loop_footer
                %s468 = sadd.s32 1, %s464
              $region190: #{fno_block_forward.2} parent=183 // loop_footer_branch
                %463 = sbr.rel target = $region186
              $region191: #{fno_block_forward.2} parent=183 // loop_exit
                _
            $region184: #{fno_block_forward.2} parent=175 // pred_fallthru
              _
          $region176: #{fno_block_forward.2} parent=171 // pred_fallthru
            _
          %515 = vnop
        $region172: #{fno_block_forward.2} parent=15 // pred_fallthru
          _
      $region16: #{fno_block_forward.2} parent=5 // pred_fallthru
        _
      %p516 = scmp.le.s32.totalorder 1, %s13
      %p517 = scmp.lt.s32.totalorder %s13, 3
      %p518 = pnand %p516, %p517
      %p519 = pneg %p518
      // Predicated region
      $region207: #{fno_block_forward.2} parent=5 // pred_check
        _
      $region208: #{fno_block_forward.2} parent=5 // pred_check_branch
        %521 = sbr.rel (%p518) target = $region210
      $region209: #{fno_block_forward.2} parent=5 // pred_region
        %s522 = ssub.s32 %s13, 1
        %s523 = sand.u32 %s26, 1
        %s524 = sand.u32 %s26, 1
        %s525 = smul.addr %s524, 16
        %s526 = scalar_lea.vmem [#allocation2], %s525
        // Predicated region
        $region211: #{fno_block_forward.2} parent=209 // pred_check
          %p527 = pneg %p39
        $region212: #{fno_block_forward.2} parent=209 // pred_check_branch
          %529 = sbr.rel (%p527) target = $region214
        $region213: #{fno_block_forward.2} parent=209 // pred_region
          _
        $region214: #{fno_block_forward.2} parent=209 // pred_fallthru
          _
        %s530 = sand.u32 %s52, 1
        %s531 = sand.u32 %s52, 1
        %s532 = smul.addr %s531, 16
        %s533 = scalar_lea.vmem [#allocation3], %s532
        // Predicated region
        $region215: #{fno_block_forward.2} parent=209 // pred_check
          %p534 = pneg %p65
        $region216: #{fno_block_forward.2} parent=209 // pred_check_branch
          %536 = sbr.rel (%p534) target = $region218
        $region217: #{fno_block_forward.2} parent=209 // pred_region
          _
        $region218: #{fno_block_forward.2} parent=209 // pred_fallthru
          _
        %s537 = sand.u32 %s78, 1
        %s538 = sand.u32 %s78, 1
        %s539 = smul.addr %s538, 64
        %s540 = scalar_lea.vmem [#allocation4], %s539
        // Predicated region
        $region219: #{fno_block_forward.2} parent=209 // pred_check
          %p541 = pneg %p91
        $region220: #{fno_block_forward.2} parent=209 // pred_check_branch
          %543 = sbr.rel (%p541) target = $region222
        $region221: #{fno_block_forward.2} parent=209 // pred_region
          _
        $region222: #{fno_block_forward.2} parent=209 // pred_fallthru
          _
        %s544 = sand.u32 %s104, 1
        %s545 = sand.u32 %s104, 1
        %s546 = smul.addr %s545, 64
        %s547 = scalar_lea.vmem [#allocation5], %s546
        // Predicated region
        $region223: #{fno_block_forward.2} parent=209 // pred_check
          %p548 = pneg %p117
        $region224: #{fno_block_forward.2} parent=209 // pred_check_branch
          %550 = sbr.rel (%p548) target = $region226
        $region225: #{fno_block_forward.2} parent=209 // pred_region
          _
        $region226: #{fno_block_forward.2} parent=209 // pred_fallthru
          _
        %s551 = sand.u32 %s130, 1
        %s552 = sand.u32 %s130, 1
        %s553 = smul.addr %s552, 64
        %s554 = scalar_lea.vmem [#allocation6], %s553
        // Predicated region
        $region227: #{fno_block_forward.2} parent=209 // pred_check
          %p555 = pneg %p143
        $region228: #{fno_block_forward.2} parent=209 // pred_check_branch
          %557 = sbr.rel (%p555) target = $region230
        $region229: #{fno_block_forward.2} parent=209 // pred_region
          _
        $region230: #{fno_block_forward.2} parent=209 // pred_fallthru
          _
        %s558 = sand.u32 %s26, 1
        %s559 = sand.u32 %s26, 1
        %s560 = smul.addr %s559, 16
        %s561 = scalar_lea.vmem [#allocation2], %s560
        %p562 = pneg %p39
        %p563 = pneg %p36
        %s564 = sand.u32 %s52, 1
        %s565 = sand.u32 %s52, 1
        %s566 = smul.addr %s565, 16
        %s567 = scalar_lea.vmem [#allocation3], %s566
        %p568 = pneg %p65
        %p569 = pneg %p62
        %s570 = sand.u32 %s78, 1
        %s571 = sand.u32 %s78, 1
        %s572 = smul.addr %s571, 64
        %s573 = scalar_lea.vmem [#allocation4], %s572
        %p574 = pneg %p91
        %p575 = pneg %p88
        %s576 = sand.u32 %s104, 1
        %s577 = sand.u32 %s104, 1
        %s578 = smul.addr %s577, 64
        %s579 = scalar_lea.vmem [#allocation5], %s578
        %p580 = pneg %p117
        %p581 = pneg %p114
        %s582 = sand.u32 %s130, 1
        %s583 = sand.u32 %s130, 1
        %s584 = smul.addr %s583, 64
        %s585 = scalar_lea.vmem [#allocation6], %s584
        %p586 = pneg %p143
        %p587 = pneg %p140
        %p588 = pneg %p169
        %p589 = pneg %p166
        %s590 = sand.u32 %s156, 1
        %s591 = sand.u32 %s156, 1
        %s592 = smul.addr %s591, 16
        %s593 = scalar_lea.vmem [#allocation7], %s592
        %p594 = pneg %p195
        %p595 = pneg %p192
        %s596 = sand.u32 %s182, 1
        %s597 = sand.u32 %s182, 1
        %s598 = smul.addr %s597, 16
        %s599 = scalar_lea.vmem [#allocation8], %s598
        %v600 = vld [vmem:[%s526] sm:$0xff]
        %v601 = vld [vmem:[%s526 + $0x8] sm:$0xff]
        %v602 = vld [vmem:[%s533] sm:$0xff]
        %v603 = vld [vmem:[%s533 + $0x8] sm:$0xff]
        %v604 = vld [vmem:[%s540] sm:$0xff]
        %v605 = vld [vmem:[%s540 + $0x8] sm:$0xff]
        %v606 = vld [vmem:[%s540 + $0x10] sm:$0xff]
        %v607 = vld [vmem:[%s540 + $0x18] sm:$0xff]
        %v608 = vld [vmem:[%s540 + $0x20] sm:$0xff]
        %v609 = vld [vmem:[%s540 + $0x28] sm:$0xff]
        %v610 = vld [vmem:[%s540 + $0x30] sm:$0xff]
        %v611 = vld [vmem:[%s540 + $0x38] sm:$0xff]
        %v612 = vld [vmem:[%s547] sm:$0xff]
        %v613 = vld [vmem:[%s547 + $0x8] sm:$0xff]
        %v614 = vld [vmem:[%s547 + $0x10] sm:$0xff]
        %v615 = vld [vmem:[%s547 + $0x18] sm:$0xff]
        %v616 = vld [vmem:[%s547 + $0x20] sm:$0xff]
        %v617 = vld [vmem:[%s547 + $0x28] sm:$0xff]
        %v618 = vld [vmem:[%s547 + $0x30] sm:$0xff]
        %v619 = vld [vmem:[%s547 + $0x38] sm:$0xff]
        %v620 = vld [vmem:[%s554] sm:$0xff]
        %v621 = vld [vmem:[%s554 + $0x8] sm:$0xff]
        %v622 = vld [vmem:[%s554 + $0x10] sm:$0xff]
        %v623 = vld [vmem:[%s554 + $0x18] sm:$0xff]
        %v624 = vld [vmem:[%s554 + $0x20] sm:$0xff]
        %v625 = vld [vmem:[%s554 + $0x28] sm:$0xff]
        %v626 = vld [vmem:[%s554 + $0x30] sm:$0xff]
        %v627 = vld [vmem:[%s554 + $0x38] sm:$0xff]
        %v628 = vadd.f32 %v600, %v602
        %v629 = vadd.f32 %v601, %v603
        %v630 = vlaneseq
        %v631 = vshrl.u32 %v630, 7
        %v632 = vsub.s32 0, %v631
        %v633 = vrot.slane %v628, %v632
        %v634 = vlaneseq
        %v635 = vshrl.u32 %v634, 7
        %v636 = vsub.s32 0, %v635
        %v637 = vrot.slane %v629, %v636
        %v638 = vmul.f32 %v633, %v604
        %v639 = vmul.f32 %v637, %v604
        %v640 = vlaneseq
        %v641 = vshrl.u32 %v640, 7
        %v642 = vsub.s32 0, %v641
        %v643 = vrot.slane %v602, %v642
        %v644 = vlaneseq
        %v645 = vshrl.u32 %v644, 7
        %v646 = vsub.s32 0, %v645
        %v647 = vrot.slane %v603, %v646
        %v648 = vmul.f32 %v643, %v620
        %v649 = vmul.f32 %v647, %v620
        %v650 = vsub.f32 %v638, %v648
        %v651 = vsub.f32 %v639, %v649
        %v652 = vadd.f32 %v650, 0.0
        %v653 = vadd.f32 %v651, 0.0
        %v654 = vlaneseq
        %v655 = vshrl.u32 %v654, 7
        %v656 = vsub.s32 0, %v655
        %v657 = vrot.slane %v600, %v656
        %v658 = vlaneseq
        %v659 = vshrl.u32 %v658, 7
        %v660 = vsub.s32 0, %v659
        %v661 = vrot.slane %v601, %v660
        %v662 = vmul.f32 %v657, %v612
        %v663 = vmul.f32 %v661, %v612
        %v664 = vadd.f32 %v638, %v662
        %v665 = vadd.f32 %v639, %v663
        %v666 = vadd.f32 %v664, 0.0
        %v667 = vadd.f32 %v665, 0.0
        %v668 = vlaneseq
        %v669 = vshrl.u32 %v668, 7
        %v670 = vsub.s32 1, %v669
        %v671 = vrot.slane %v628, %v670
        %v672 = vlaneseq
        %v673 = vshrl.u32 %v672, 7
        %v674 = vsub.s32 1, %v673
        %v675 = vrot.slane %v629, %v674
        %v676 = vmul.f32 %v671, %v605
        %v677 = vmul.f32 %v675, %v605
        %v678 = vlaneseq
        %v679 = vshrl.u32 %v678, 7
        %v680 = vsub.s32 1, %v679
        %v681 = vrot.slane %v602, %v680
        %v682 = vlaneseq
        %v683 = vshrl.u32 %v682, 7
        %v684 = vsub.s32 1, %v683
        %v685 = vrot.slane %v603, %v684
        %v686 = vmul.f32 %v681, %v621
        %v687 = vmul.f32 %v685, %v621
        %v688 = vsub.f32 %v676, %v686
        %v689 = vsub.f32 %v677, %v687
        %v690 = vadd.f32 %v652, %v688
        %v691 = vadd.f32 %v653, %v689
        %v692 = vlaneseq
        %v693 = vshrl.u32 %v692, 7
        %v694 = vsub.s32 1, %v693
        %v695 = vrot.slane %v600, %v694
        %v696 = vlaneseq
        %v697 = vshrl.u32 %v696, 7
        %v698 = vsub.s32 1, %v697
        %v699 = vrot.slane %v601, %v698
        %v700 = vmul.f32 %v695, %v613
        %v701 = vmul.f32 %v699, %v613
        %v702 = vadd.f32 %v676, %v700
        %v703 = vadd.f32 %v677, %v701
        %v704 = vadd.f32 %v666, %v702
        %v705 = vadd.f32 %v667, %v703
        %v706 = vlaneseq
        %v707 = vshrl.u32 %v706, 7
        %v708 = vsub.s32 2, %v707
        %v709 = vrot.slane %v628, %v708
        %v710 = vlaneseq
        %v711 = vshrl.u32 %v710, 7
        %v712 = vsub.s32 2, %v711
        %v713 = vrot.slane %v629, %v712
        %v714 = vmul.f32 %v709, %v606
        %v715 = vmul.f32 %v713, %v606
        %v716 = vlaneseq
        %v717 = vshrl.u32 %v716, 7
        %v718 = vsub.s32 2, %v717
        %v719 = vrot.slane %v602, %v718
        %v720 = vlaneseq
        %v721 = vshrl.u32 %v720, 7
        %v722 = vsub.s32 2, %v721
        %v723 = vrot.slane %v603, %v722
        %v724 = vmul.f32 %v719, %v622
        %v725 = vmul.f32 %v723, %v622
        %v726 = vsub.f32 %v714, %v724
        %v727 = vsub.f32 %v715, %v725
        %v728 = vadd.f32 %v690, %v726
        %v729 = vadd.f32 %v691, %v727
        %v730 = vlaneseq
        %v731 = vshrl.u32 %v730, 7
        %v732 = vsub.s32 2, %v731
        %v733 = vrot.slane %v600, %v732
        %v734 = vlaneseq
        %v735 = vshrl.u32 %v734, 7
        %v736 = vsub.s32 2, %v735
        %v737 = vrot.slane %v601, %v736
        %v738 = vmul.f32 %v733, %v614
        %v739 = vmul.f32 %v737, %v614
        %v740 = vadd.f32 %v714, %v738
        %v741 = vadd.f32 %v715, %v739
        %v742 = vadd.f32 %v704, %v740
        %v743 = vadd.f32 %v705, %v741
        %v744 = vlaneseq
        %v745 = vshrl.u32 %v744, 7
        %v746 = vsub.s32 3, %v745
        %v747 = vrot.slane %v628, %v746
        %v748 = vlaneseq
        %v749 = vshrl.u32 %v748, 7
        %v750 = vsub.s32 3, %v749
        %v751 = vrot.slane %v629, %v750
        %v752 = vmul.f32 %v747, %v607
        %v753 = vmul.f32 %v751, %v607
        %v754 = vlaneseq
        %v755 = vshrl.u32 %v754, 7
        %v756 = vsub.s32 3, %v755
        %v757 = vrot.slane %v602, %v756
        %v758 = vlaneseq
        %v759 = vshrl.u32 %v758, 7
        %v760 = vsub.s32 3, %v759
        %v761 = vrot.slane %v603, %v760
        %v762 = vmul.f32 %v757, %v623
        %v763 = vmul.f32 %v761, %v623
        %v764 = vsub.f32 %v752, %v762
        %v765 = vsub.f32 %v753, %v763
        %v766 = vadd.f32 %v728, %v764
        %v767 = vadd.f32 %v729, %v765
        %v768 = vlaneseq
        %v769 = vshrl.u32 %v768, 7
        %v770 = vsub.s32 3, %v769
        %v771 = vrot.slane %v600, %v770
        %v772 = vlaneseq
        %v773 = vshrl.u32 %v772, 7
        %v774 = vsub.s32 3, %v773
        %v775 = vrot.slane %v601, %v774
        %v776 = vmul.f32 %v771, %v615
        %v777 = vmul.f32 %v775, %v615
        %v778 = vadd.f32 %v752, %v776
        %v779 = vadd.f32 %v753, %v777
        %v780 = vadd.f32 %v742, %v778
        %v781 = vadd.f32 %v743, %v779
        %v782 = vlaneseq
        %v783 = vshrl.u32 %v782, 7
        %v784 = vsub.s32 4, %v783
        %v785 = vrot.slane %v628, %v784
        %v786 = vlaneseq
        %v787 = vshrl.u32 %v786, 7
        %v788 = vsub.s32 4, %v787
        %v789 = vrot.slane %v629, %v788
        %v790 = vmul.f32 %v785, %v608
        %v791 = vmul.f32 %v789, %v608
        %v792 = vlaneseq
        %v793 = vshrl.u32 %v792, 7
        %v794 = vsub.s32 4, %v793
        %v795 = vrot.slane %v602, %v794
        %v796 = vlaneseq
        %v797 = vshrl.u32 %v796, 7
        %v798 = vsub.s32 4, %v797
        %v799 = vrot.slane %v603, %v798
        %v800 = vmul.f32 %v795, %v624
        %v801 = vmul.f32 %v799, %v624
        %v802 = vsub.f32 %v790, %v800
        %v803 = vsub.f32 %v791, %v801
        %v804 = vadd.f32 %v766, %v802
        %v805 = vadd.f32 %v767, %v803
        %v806 = vlaneseq
        %v807 = vshrl.u32 %v806, 7
        %v808 = vsub.s32 4, %v807
        %v809 = vrot.slane %v600, %v808
        %v810 = vlaneseq
        %v811 = vshrl.u32 %v810, 7
        %v812 = vsub.s32 4, %v811
        %v813 = vrot.slane %v601, %v812
        %v814 = vmul.f32 %v809, %v616
        %v815 = vmul.f32 %v813, %v616
        %v816 = vadd.f32 %v790, %v814
        %v817 = vadd.f32 %v791, %v815
        %v818 = vadd.f32 %v780, %v816
        %v819 = vadd.f32 %v781, %v817
        %v820 = vlaneseq
        %v821 = vshrl.u32 %v820, 7
        %v822 = vsub.s32 5, %v821
        %v823 = vrot.slane %v628, %v822
        %v824 = vlaneseq
        %v825 = vshrl.u32 %v824, 7
        %v826 = vsub.s32 5, %v825
        %v827 = vrot.slane %v629, %v826
        %v828 = vmul.f32 %v823, %v609
        %v829 = vmul.f32 %v827, %v609
        %v830 = vlaneseq
        %v831 = vshrl.u32 %v830, 7
        %v832 = vsub.s32 5, %v831
        %v833 = vrot.slane %v602, %v832
        %v834 = vlaneseq
        %v835 = vshrl.u32 %v834, 7
        %v836 = vsub.s32 5, %v835
        %v837 = vrot.slane %v603, %v836
        %v838 = vmul.f32 %v833, %v625
        %v839 = vmul.f32 %v837, %v625
        %v840 = vsub.f32 %v828, %v838
        %v841 = vsub.f32 %v829, %v839
        %v842 = vadd.f32 %v804, %v840
        %v843 = vadd.f32 %v805, %v841
        %v844 = vlaneseq
        %v845 = vshrl.u32 %v844, 7
        %v846 = vsub.s32 5, %v845
        %v847 = vrot.slane %v600, %v846
        %v848 = vlaneseq
        %v849 = vshrl.u32 %v848, 7
        %v850 = vsub.s32 5, %v849
        %v851 = vrot.slane %v601, %v850
        %v852 = vmul.f32 %v847, %v617
        %v853 = vmul.f32 %v851, %v617
        %v854 = vadd.f32 %v828, %v852
        %v855 = vadd.f32 %v829, %v853
        %v856 = vadd.f32 %v818, %v854
        %v857 = vadd.f32 %v819, %v855
        %v858 = vlaneseq
        %v859 = vshrl.u32 %v858, 7
        %v860 = vsub.s32 6, %v859
        %v861 = vrot.slane %v628, %v860
        %v862 = vlaneseq
        %v863 = vshrl.u32 %v862, 7
        %v864 = vsub.s32 6, %v863
        %v865 = vrot.slane %v629, %v864
        %v866 = vmul.f32 %v861, %v610
        %v867 = vmul.f32 %v865, %v610
        %v868 = vlaneseq
        %v869 = vshrl.u32 %v868, 7
        %v870 = vsub.s32 6, %v869
        %v871 = vrot.slane %v602, %v870
        %v872 = vlaneseq
        %v873 = vshrl.u32 %v872, 7
        %v874 = vsub.s32 6, %v873
        %v875 = vrot.slane %v603, %v874
        %v876 = vmul.f32 %v871, %v626
        %v877 = vmul.f32 %v875, %v626
        %v878 = vsub.f32 %v866, %v876
        %v879 = vsub.f32 %v867, %v877
        %v880 = vadd.f32 %v842, %v878
        %v881 = vadd.f32 %v843, %v879
        %v882 = vlaneseq
        %v883 = vshrl.u32 %v882, 7
        %v884 = vsub.s32 6, %v883
        %v885 = vrot.slane %v600, %v884
        %v886 = vlaneseq
        %v887 = vshrl.u32 %v886, 7
        %v888 = vsub.s32 6, %v887
        %v889 = vrot.slane %v601, %v888
        %v890 = vmul.f32 %v885, %v618
        %v891 = vmul.f32 %v889, %v618
        %v892 = vadd.f32 %v866, %v890
        %v893 = vadd.f32 %v867, %v891
        %v894 = vadd.f32 %v856, %v892
        %v895 = vadd.f32 %v857, %v893
        %v896 = vlaneseq
        %v897 = vshrl.u32 %v896, 7
        %v898 = vsub.s32 7, %v897
        %v899 = vrot.slane %v628, %v898
        %v900 = vlaneseq
        %v901 = vshrl.u32 %v900, 7
        %v902 = vsub.s32 7, %v901
        %v903 = vrot.slane %v629, %v902
        %v904 = vmul.f32 %v899, %v611
        %v905 = vmul.f32 %v903, %v611
        %v906 = vlaneseq
        %v907 = vshrl.u32 %v906, 7
        %v908 = vsub.s32 7, %v907
        %v909 = vrot.slane %v602, %v908
        %v910 = vlaneseq
        %v911 = vshrl.u32 %v910, 7
        %v912 = vsub.s32 7, %v911
        %v913 = vrot.slane %v603, %v912
        %v914 = vmul.f32 %v909, %v627
        %v915 = vmul.f32 %v913, %v627
        %v916 = vsub.f32 %v904, %v914
        %v917 = vsub.f32 %v905, %v915
        %v918 = vadd.f32 %v880, %v916
        %v919 = vadd.f32 %v881, %v917
        %v920 = vlaneseq
        %v921 = vshrl.u32 %v920, 7
        %v922 = vsub.s32 7, %v921
        %v923 = vrot.slane %v600, %v922
        %v924 = vlaneseq
        %v925 = vshrl.u32 %v924, 7
        %v926 = vsub.s32 7, %v925
        %v927 = vrot.slane %v601, %v926
        %v928 = vmul.f32 %v923, %v619
        %v929 = vmul.f32 %v927, %v619
        %v930 = vadd.f32 %v904, %v928
        %v931 = vadd.f32 %v905, %v929
        %v932 = vadd.f32 %v894, %v930
        %v933 = vadd.f32 %v895, %v931
        %934 = vst [vmem:[%s593] sm:$0xff] %v918
        %935 = vst [vmem:[%s593 + $0x8] sm:$0xff] %v919
        %936 = vst [vmem:[%s599] sm:$0xff] %v932
        %937 = vst [vmem:[%s599 + $0x8] sm:$0xff] %v933
        %s938 = sand.u32 %s156, 1
        %s939 = sand.u32 %s156, 1
        %s940 = smul.addr %s939, 16
        %s941 = scalar_lea.vmem [#allocation7], %s940
        %s942 = sand.u32 %s182, 1
        %s943 = sand.u32 %s182, 1
        %s944 = smul.addr %s943, 16
        %s945 = scalar_lea.vmem [#allocation8], %s944
        // Predicated region
        $region231: #{fno_block_forward.2} parent=209 // pred_check
          %p946 = pneg %p166
        $region232: #{fno_block_forward.2} parent=209 // pred_check_branch
          %948 = sbr.rel (%p946) target = $region234
        $region233: #{fno_block_forward.2} parent=209 // pred_region
          %s949 = smul.addr %s18, 8
          %s950 = scalar_lea.vmem %s5, %s949
          // Predicated region
          $region235: #{fno_block_forward.2} parent=233 // pred_check
            _
          $region236: #{fno_block_forward.2} parent=233 // pred_check_branch
            %952 = sbr.rel (0) target = $region238
          $region237: #{fno_block_forward.2} parent=233 // pred_region
            // Predicated region
            $region239: #{fno_block_forward.2} parent=237 // pred_check
              _
            $region240: #{fno_block_forward.2} parent=237 // pred_check_branch
              %954 = sbr.rel (0) target = $region242
            $region241: #{fno_block_forward.2} parent=237 // pred_region
              // Predicated region
              $region254: #{fno_block_forward.2} parent=241 // pred_check
                _
              $region255: #{fno_block_forward.2} parent=241 // pred_check_branch
                %972 = sbr.rel (0) target = $region257
              $region256: #{fno_block_forward.2} parent=241 // pred_region
                loop: start=0, step=1, limit=1
                $region258: #{fno_block_forward.2} parent=256 // loop_pre_header
                  _
                $region259: #{fno_block_forward.2} parent=256 // loop_header
                  %s974 = sphi 0, %s978
                  %p975 = scmp.ge.s32.totalorder %s974, 1
                  %s979 = sphi %s941, %s941
                  %s980 = sphi %s950, %s950
                $region260: #{fno_block_forward.2} parent=256 // loop_header_branch
                  %977 = sbr.rel (%p975) target = $region264
                $region261: #{fno_block_forward.2} parent=256 // loop_body
                  %v981 = vld [vmem:[%s979] sm:$0xff]
                  %982 = vst [vmem:[%s980] sm:$0xff] %v981
                  %v983 = vld [vmem:[%s979 + $0x8] sm:$0xff]
                  %984 = vst [vmem:[%s980 + $0x10] sm:$0xff] %v983
                $region262: #{fno_block_forward.2} parent=256 // loop_footer
                  %s978 = sadd.s32 1, %s974
                $region263: #{fno_block_forward.2} parent=256 // loop_footer_branch
                  %973 = sbr.rel target = $region259
                $region264: #{fno_block_forward.2} parent=256 // loop_exit
                  _
              $region257: #{fno_block_forward.2} parent=241 // pred_fallthru
                _
              // Predicated region
              $region265: #{fno_block_forward.2} parent=241 // pred_check
                _
              $region266: #{fno_block_forward.2} parent=241 // pred_check_branch
                %986 = sbr.rel target = $region268
              $region267: #{fno_block_forward.2} parent=241 // pred_region
                _
              $region268: #{fno_block_forward.2} parent=241 // pred_fallthru
                _
            $region242: #{fno_block_forward.2} parent=237 // pred_fallthru
              _
            // Predicated region
            $region243: #{fno_block_forward.2} parent=237 // pred_check
              _
            $region244: #{fno_block_forward.2} parent=237 // pred_check_branch
              %956 = sbr.rel target = $region246
            $region245: #{fno_block_forward.2} parent=237 // pred_region
              %s958 = ssub.s32 256, 1
              loop: start=0, step=1, limit=1
              $region247: #{fno_block_forward.2} parent=245 // loop_pre_header
                _
              $region248: #{fno_block_forward.2} parent=245 // loop_header
                %s960 = sphi 0, %s964
                %p961 = scmp.ge.s32.totalorder %s960, 1
                %s965 = sphi %s941, %s941
                %s966 = sphi %s950, %s950
              $region249: #{fno_block_forward.2} parent=245 // loop_header_branch
                %963 = sbr.rel (%p961) target = $region253
              $region250: #{fno_block_forward.2} parent=245 // loop_body
                %v967 = vld [vmem:[%s965] sm:%s958]
                %968 = vst [vmem:[%s966] sm:%s958] %v967
                %v969 = vld [vmem:[%s965 + $0x8] sm:%s958]
                %970 = vst [vmem:[%s966 + $0x10] sm:%s958] %v969
              $region251: #{fno_block_forward.2} parent=245 // loop_footer
                %s964 = sadd.s32 1, %s960
              $region252: #{fno_block_forward.2} parent=245 // loop_footer_branch
                %959 = sbr.rel target = $region248
              $region253: #{fno_block_forward.2} parent=245 // loop_exit
                _
            $region246: #{fno_block_forward.2} parent=237 // pred_fallthru
              _
          $region238: #{fno_block_forward.2} parent=233 // pred_fallthru
            _
          %987 = vnop
        $region234: #{fno_block_forward.2} parent=209 // pred_fallthru
          _
        // Predicated region
        $region269: #{fno_block_forward.2} parent=209 // pred_check
          %p988 = pneg %p192
        $region270: #{fno_block_forward.2} parent=209 // pred_check_branch
          %990 = sbr.rel (%p988) target = $region272
        $region271: #{fno_block_forward.2} parent=209 // pred_region
          %s991 = smul.addr %s18, 8
          %s992 = scalar_lea.vmem %s6, %s991
          // Predicated region
          $region273: #{fno_block_forward.2} parent=271 // pred_check
            _
          $region274: #{fno_block_forward.2} parent=271 // pred_check_branch
            %994 = sbr.rel (0) target = $region276
          $region275: #{fno_block_forward.2} parent=271 // pred_region
            // Predicated region
            $region277: #{fno_block_forward.2} parent=275 // pred_check
              _
            $region278: #{fno_block_forward.2} parent=275 // pred_check_branch
              %996 = sbr.rel (0) target = $region280
            $region279: #{fno_block_forward.2} parent=275 // pred_region
              // Predicated region
              $region292: #{fno_block_forward.2} parent=279 // pred_check
                _
              $region293: #{fno_block_forward.2} parent=279 // pred_check_branch
                %1014 = sbr.rel (0) target = $region295
              $region294: #{fno_block_forward.2} parent=279 // pred_region
                loop: start=0, step=1, limit=1
                $region296: #{fno_block_forward.2} parent=294 // loop_pre_header
                  _
                $region297: #{fno_block_forward.2} parent=294 // loop_header
                  %s1016 = sphi 0, %s1020
                  %p1017 = scmp.ge.s32.totalorder %s1016, 1
                  %s1021 = sphi %s945, %s945
                  %s1022 = sphi %s992, %s992
                $region298: #{fno_block_forward.2} parent=294 // loop_header_branch
                  %1019 = sbr.rel (%p1017) target = $region302
                $region299: #{fno_block_forward.2} parent=294 // loop_body
                  %v1023 = vld [vmem:[%s1021] sm:$0xff]
                  %1024 = vst [vmem:[%s1022] sm:$0xff] %v1023
                  %v1025 = vld [vmem:[%s1021 + $0x8] sm:$0xff]
                  %1026 = vst [vmem:[%s1022 + $0x10] sm:$0xff] %v1025
                $region300: #{fno_block_forward.2} parent=294 // loop_footer
                  %s1020 = sadd.s32 1, %s1016
                $region301: #{fno_block_forward.2} parent=294 // loop_footer_branch
                  %1015 = sbr.rel target = $region297
                $region302: #{fno_block_forward.2} parent=294 // loop_exit
                  _
              $region295: #{fno_block_forward.2} parent=279 // pred_fallthru
                _
              // Predicated region
              $region303: #{fno_block_forward.2} parent=279 // pred_check
                _
              $region304: #{fno_block_forward.2} parent=279 // pred_check_branch
                %1028 = sbr.rel target = $region306
              $region305: #{fno_block_forward.2} parent=279 // pred_region
                _
              $region306: #{fno_block_forward.2} parent=279 // pred_fallthru
                _
            $region280: #{fno_block_forward.2} parent=275 // pred_fallthru
              _
            // Predicated region
            $region281: #{fno_block_forward.2} parent=275 // pred_check
              _
            $region282: #{fno_block_forward.2} parent=275 // pred_check_branch
              %998 = sbr.rel target = $region284
            $region283: #{fno_block_forward.2} parent=275 // pred_region
              %s1000 = ssub.s32 256, 1
              loop: start=0, step=1, limit=1
              $region285: #{fno_block_forward.2} parent=283 // loop_pre_header
                _
              $region286: #{fno_block_forward.2} parent=283 // loop_header
                %s1002 = sphi 0, %s1006
                %p1003 = scmp.ge.s32.totalorder %s1002, 1
                %s1007 = sphi %s945, %s945
                %s1008 = sphi %s992, %s992
              $region287: #{fno_block_forward.2} parent=283 // loop_header_branch
                %1005 = sbr.rel (%p1003) target = $region291
              $region288: #{fno_block_forward.2} parent=283 // loop_body
                %v1009 = vld [vmem:[%s1007] sm:%s1000]
                %1010 = vst [vmem:[%s1008] sm:%s1000] %v1009
                %v1011 = vld [vmem:[%s1007 + $0x8] sm:%s1000]
                %1012 = vst [vmem:[%s1008 + $0x10] sm:%s1000] %v1011
              $region289: #{fno_block_forward.2} parent=283 // loop_footer
                %s1006 = sadd.s32 1, %s1002
              $region290: #{fno_block_forward.2} parent=283 // loop_footer_branch
                %1001 = sbr.rel target = $region286
              $region291: #{fno_block_forward.2} parent=283 // loop_exit
                _
            $region284: #{fno_block_forward.2} parent=275 // pred_fallthru
              _
          $region276: #{fno_block_forward.2} parent=271 // pred_fallthru
            _
          %1029 = vnop
        $region272: #{fno_block_forward.2} parent=209 // pred_fallthru
          _
      $region210: #{fno_block_forward.2} parent=5 // pred_fallthru
        _
      %p1030 = scmp.le.s32.totalorder 2, %s13
      // Predicated region
      $region307: #{fno_block_forward.2} parent=5 // pred_check
        %p1031 = pneg %p1030
      $region308: #{fno_block_forward.2} parent=5 // pred_check_branch
        %1033 = sbr.rel (%p1031) target = $region310
      $region309: #{fno_block_forward.2} parent=5 // pred_region
        %s1034 = ssub.s32 %s13, 2
        // Predicated region
        $region311: #{fno_block_forward.2} parent=309 // pred_check
          %p1035 = pneg %p172
        $region312: #{fno_block_forward.2} parent=309 // pred_check_branch
          %1037 = sbr.rel (%p1035) target = $region314
        $region313: #{fno_block_forward.2} parent=309 // pred_region
          %s1038 = sand.u32 %s157, 1
          %s1039 = sand.u32 %s157, 1
          %s1040 = smul.addr %s1039, 16
          %s1041 = scalar_lea.vmem [#allocation7], %s1040
        $region314: #{fno_block_forward.2} parent=309 // pred_fallthru
          _
        // Predicated region
        $region315: #{fno_block_forward.2} parent=309 // pred_check
          %p1042 = pneg %p198
        $region316: #{fno_block_forward.2} parent=309 // pred_check_branch
          %1044 = sbr.rel (%p1042) target = $region318
        $region317: #{fno_block_forward.2} parent=309 // pred_region
          %s1045 = sand.u32 %s183, 1
          %s1046 = sand.u32 %s183, 1
          %s1047 = smul.addr %s1046, 16
          %s1048 = scalar_lea.vmem [#allocation8], %s1047
        $region318: #{fno_block_forward.2} parent=309 // pred_fallthru
          _
      $region310: #{fno_block_forward.2} parent=5 // pred_fallthru
        _
    $region6: #{fno_block_forward.2} parent=1 // loop_footer
      %s17 = sadd.s32 1, %s13
    $region7: #{fno_block_forward.2} parent=1 // loop_footer_branch
      %12 = sbr.rel target = $region3
    $region8: #{fno_block_forward.2} parent=1 // loop_exit
      _

// kernel: reverse.1
$region0: #{reverse.1}
  #allocation0 [shape = 's32[1]{0}', space=sflag, size = 0x4, scoped, tag = 'scoped memory for reverse.1']
  %s0 = inlined_call_operand.vmem [shape: f32[2,8,8,8,3], index: 0, kind: input, shape index: {}]
  %s1 = inlined_call_operand.vmem [shape: f32[2,8,8,8,3], index: 1, kind: output, shape index: {}]
  %s2 = scalar_lea.vmem %s0, 16
  %v3 = vld [vmem:[%s2] sm:$0xff]
  %4 = vst [vmem:[%s1] sm:$0xff] %v3
  %s5 = scalar_lea.vmem %s0, 208
  %v6 = vld [vmem:[%s5] sm:$0xff]
  %s7 = scalar_lea.vmem %s1, 192
  %8 = vst [vmem:[%s7] sm:$0xff] %v6
  %s9 = scalar_lea.vmem %s0, 40
  %v10 = vld [vmem:[%s9] sm:$0xff]
  %s11 = scalar_lea.vmem %s1, 24
  %12 = vst [vmem:[%s11] sm:$0xff] %v10
  %s13 = scalar_lea.vmem %s0, 232
  %v14 = vld [vmem:[%s13] sm:$0xff]
  %s15 = scalar_lea.vmem %s1, 216
  %16 = vst [vmem:[%s15] sm:$0xff] %v14
  %s17 = scalar_lea.vmem %s0, 64
  %v18 = vld [vmem:[%s17] sm:$0xff]
  %s19 = scalar_lea.vmem %s1, 48
  %20 = vst [vmem:[%s19] sm:$0xff] %v18
  %s21 = scalar_lea.vmem %s0, 256
  %v22 = vld [vmem:[%s21] sm:$0xff]
  %s23 = scalar_lea.vmem %s1, 240
  %24 = vst [vmem:[%s23] sm:$0xff] %v22
  %s25 = scalar_lea.vmem %s0, 88
  %v26 = vld [vmem:[%s25] sm:$0xff]
  %s27 = scalar_lea.vmem %s1, 72
  %28 = vst [vmem:[%s27] sm:$0xff] %v26
  %s29 = scalar_lea.vmem %s0, 280
  %v30 = vld [vmem:[%s29] sm:$0xff]
  %s31 = scalar_lea.vmem %s1, 264
  %32 = vst [vmem:[%s31] sm:$0xff] %v30
  %s33 = scalar_lea.vmem %s0, 112
  %v34 = vld [vmem:[%s33] sm:$0xff]
  %s35 = scalar_lea.vmem %s1, 96
  %36 = vst [vmem:[%s35] sm:$0xff] %v34
  %s37 = scalar_lea.vmem %s0, 304
  %v38 = vld [vmem:[%s37] sm:$0xff]
  %s39 = scalar_lea.vmem %s1, 288
  %40 = vst [vmem:[%s39] sm:$0xff] %v38
  %s41 = scalar_lea.vmem %s0, 136
  %v42 = vld [vmem:[%s41] sm:$0xff]
  %s43 = scalar_lea.vmem %s1, 120
  %44 = vst [vmem:[%s43] sm:$0xff] %v42
  %s45 = scalar_lea.vmem %s0, 328
  %v46 = vld [vmem:[%s45] sm:$0xff]
  %s47 = scalar_lea.vmem %s1, 312
  %48 = vst [vmem:[%s47] sm:$0xff] %v46
  %s49 = scalar_lea.vmem %s0, 160
  %v50 = vld [vmem:[%s49] sm:$0xff]
  %s51 = scalar_lea.vmem %s1, 144
  %52 = vst [vmem:[%s51] sm:$0xff] %v50
  %s53 = scalar_lea.vmem %s0, 352
  %v54 = vld [vmem:[%s53] sm:$0xff]
  %s55 = scalar_lea.vmem %s1, 336
  %56 = vst [vmem:[%s55] sm:$0xff] %v54
  %s57 = scalar_lea.vmem %s0, 184
  %v58 = vld [vmem:[%s57] sm:$0xff]
  %s59 = scalar_lea.vmem %s1, 168
  %60 = vst [vmem:[%s59] sm:$0xff] %v58
  %s61 = scalar_lea.vmem %s0, 376
  %v62 = vld [vmem:[%s61] sm:$0xff]
  %s63 = scalar_lea.vmem %s1, 360
  %64 = vst [vmem:[%s63] sm:$0xff] %v62
  %s65 = scalar_lea.vmem %s0, 8
  %v66 = vld [vmem:[%s65] sm:$0xff]
  %s67 = scalar_lea.vmem %s1, 8
  %68 = vst [vmem:[%s67] sm:$0xff] %v66
  %s69 = scalar_lea.vmem %s0, 200
  %v70 = vld [vmem:[%s69] sm:$0xff]
  %s71 = scalar_lea.vmem %s1, 200
  %72 = vst [vmem:[%s71] sm:$0xff] %v70
  %s73 = scalar_lea.vmem %s0, 32
  %v74 = vld [vmem:[%s73] sm:$0xff]
  %s75 = scalar_lea.vmem %s1, 32
  %76 = vst [vmem:[%s75] sm:$0xff] %v74
  %s77 = scalar_lea.vmem %s0, 224
  %v78 = vld [vmem:[%s77] sm:$0xff]
  %s79 = scalar_lea.vmem %s1, 224
  %80 = vst [vmem:[%s79] sm:$0xff] %v78
  %s81 = scalar_lea.vmem %s0, 56
  %v82 = vld [vmem:[%s81] sm:$0xff]
  %s83 = scalar_lea.vmem %s1, 56
  %84 = vst [vmem:[%s83] sm:$0xff] %v82
  %s85 = scalar_lea.vmem %s0, 248
  %v86 = vld [vmem:[%s85] sm:$0xff]
  %s87 = scalar_lea.vmem %s1, 248
  %88 = vst [vmem:[%s87] sm:$0xff] %v86
  %s89 = scalar_lea.vmem %s0, 80
  %v90 = vld [vmem:[%s89] sm:$0xff]
  %s91 = scalar_lea.vmem %s1, 80
  %92 = vst [vmem:[%s91] sm:$0xff] %v90
  %s93 = scalar_lea.vmem %s0, 272
  %v94 = vld [vmem:[%s93] sm:$0xff]
  %s95 = scalar_lea.vmem %s1, 272
  %96 = vst [vmem:[%s95] sm:$0xff] %v94
  %s97 = scalar_lea.vmem %s0, 104
  %v98 = vld [vmem:[%s97] sm:$0xff]
  %s99 = scalar_lea.vmem %s1, 104
  %100 = vst [vmem:[%s99] sm:$0xff] %v98
  %s101 = scalar_lea.vmem %s0, 296
  %v102 = vld [vmem:[%s101] sm:$0xff]
  %s103 = scalar_lea.vmem %s1, 296
  %104 = vst [vmem:[%s103] sm:$0xff] %v102
  %s105 = scalar_lea.vmem %s0, 128
  %v106 = vld [vmem:[%s105] sm:$0xff]
  %s107 = scalar_lea.vmem %s1, 128
  %108 = vst [vmem:[%s107] sm:$0xff] %v106
  %s109 = scalar_lea.vmem %s0, 320
  %v110 = vld [vmem:[%s109] sm:$0xff]
  %s111 = scalar_lea.vmem %s1, 320
  %112 = vst [vmem:[%s111] sm:$0xff] %v110
  %s113 = scalar_lea.vmem %s0, 152
  %v114 = vld [vmem:[%s113] sm:$0xff]
  %s115 = scalar_lea.vmem %s1, 152
  %116 = vst [vmem:[%s115] sm:$0xff] %v114
  %s117 = scalar_lea.vmem %s0, 344
  %v118 = vld [vmem:[%s117] sm:$0xff]
  %s119 = scalar_lea.vmem %s1, 344
  %120 = vst [vmem:[%s119] sm:$0xff] %v118
  %s121 = scalar_lea.vmem %s0, 176
  %v122 = vld [vmem:[%s121] sm:$0xff]
  %s123 = scalar_lea.vmem %s1, 176
  %124 = vst [vmem:[%s123] sm:$0xff] %v122
  %s125 = scalar_lea.vmem %s0, 368
  %v126 = vld [vmem:[%s125] sm:$0xff]
  %s127 = scalar_lea.vmem %s1, 368
  %128 = vst [vmem:[%s127] sm:$0xff] %v126
  %v129 = vld [vmem:[%s0] sm:$0xff]
  %s130 = scalar_lea.vmem %s1, 16
  %131 = vst [vmem:[%s130] sm:$0xff] %v129
  %s132 = scalar_lea.vmem %s0, 192
  %v133 = vld [vmem:[%s132] sm:$0xff]
  %s134 = scalar_lea.vmem %s1, 208
  %135 = vst [vmem:[%s134] sm:$0xff] %v133
  %s136 = scalar_lea.vmem %s0, 24
  %v137 = vld [vmem:[%s136] sm:$0xff]
  %s138 = scalar_lea.vmem %s1, 40
  %139 = vst [vmem:[%s138] sm:$0xff] %v137
  %s140 = scalar_lea.vmem %s0, 216
  %v141 = vld [vmem:[%s140] sm:$0xff]
  %s142 = scalar_lea.vmem %s1, 232
  %143 = vst [vmem:[%s142] sm:$0xff] %v141
  %s144 = scalar_lea.vmem %s0, 48
  %v145 = vld [vmem:[%s144] sm:$0xff]
  %s146 = scalar_lea.vmem %s1, 64
  %147 = vst [vmem:[%s146] sm:$0xff] %v145
  %s148 = scalar_lea.vmem %s0, 240
  %v149 = vld [vmem:[%s148] sm:$0xff]
  %s150 = scalar_lea.vmem %s1, 256
  %151 = vst [vmem:[%s150] sm:$0xff] %v149
  %s152 = scalar_lea.vmem %s0, 72
  %v153 = vld [vmem:[%s152] sm:$0xff]
  %s154 = scalar_lea.vmem %s1, 88
  %155 = vst [vmem:[%s154] sm:$0xff] %v153
  %s156 = scalar_lea.vmem %s0, 264
  %v157 = vld [vmem:[%s156] sm:$0xff]
  %s158 = scalar_lea.vmem %s1, 280
  %159 = vst [vmem:[%s158] sm:$0xff] %v157
  %s160 = scalar_lea.vmem %s0, 96
  %v161 = vld [vmem:[%s160] sm:$0xff]
  %s162 = scalar_lea.vmem %s1, 112
  %163 = vst [vmem:[%s162] sm:$0xff] %v161
  %s164 = scalar_lea.vmem %s0, 288
  %v165 = vld [vmem:[%s164] sm:$0xff]
  %s166 = scalar_lea.vmem %s1, 304
  %167 = vst [vmem:[%s166] sm:$0xff] %v165
  %s168 = scalar_lea.vmem %s0, 120
  %v169 = vld [vmem:[%s168] sm:$0xff]
  %s170 = scalar_lea.vmem %s1, 136
  %171 = vst [vmem:[%s170] sm:$0xff] %v169
  %s172 = scalar_lea.vmem %s0, 312
  %v173 = vld [vmem:[%s172] sm:$0xff]
  %s174 = scalar_lea.vmem %s1, 328
  %175 = vst [vmem:[%s174] sm:$0xff] %v173
  %s176 = scalar_lea.vmem %s0, 144
  %v177 = vld [vmem:[%s176] sm:$0xff]
  %s178 = scalar_lea.vmem %s1, 160
  %179 = vst [vmem:[%s178] sm:$0xff] %v177
  %s180 = scalar_lea.vmem %s0, 336
  %v181 = vld [vmem:[%s180] sm:$0xff]
  %s182 = scalar_lea.vmem %s1, 352
  %183 = vst [vmem:[%s182] sm:$0xff] %v181
  %s184 = scalar_lea.vmem %s0, 168
  %v185 = vld [vmem:[%s184] sm:$0xff]
  %s186 = scalar_lea.vmem %s1, 184
  %187 = vst [vmem:[%s186] sm:$0xff] %v185
  %s188 = scalar_lea.vmem %s0, 360
  %v189 = vld [vmem:[%s188] sm:$0xff]
  %s190 = scalar_lea.vmem %s1, 376
  %191 = vst [vmem:[%s190] sm:$0xff] %v189

// kernel: fno_block_forward.3
$region0: #{fno_block_forward.3}
  #allocation0 [shape = 'u32[]', space=smem, size = 0x4, offset = 0x4, fixed_abs, tag = 'smem constant byte address 0x4 - core index']
  #allocation1 [shape = 'u32[144,128]{1,0:T(1,128)}', space=vmem, size = 0x12000, scoped, tag = 'internal scratch']
  %s0 = inlined_call_operand.vmem [shape: f32[2,8,512], index: 0, kind: input, shape index: {}]
  %s1 = inlined_call_operand.vmem [shape: f32[2,8,512], index: 1, kind: input, shape index: {}]
  %s2 = inlined_call_operand.vmem [shape: f32[8,8], index: 2, kind: input, shape index: {}]
  %s3 = inlined_call_operand.vmem [shape: f32[2,8,1], index: 3, kind: input, shape index: {}]
  %s4 = inlined_call_operand.vmem [shape: f32[2,8,512], index: 4, kind: output, shape index: {}]
  %s5 = sld [smem:[#allocation0]]
  $region49: #{fno_block_forward.3} parent=0
    _
  %s7 = ssub.s32 1, %s5
  %s8 = scalar_select 0, %s7, %s5
  loop: start=0, step=1, limit=4
  $region2: #{fno_block_forward.3} parent=0 // loop_pre_header
    _
  $region3: #{fno_block_forward.3} parent=0 // loop_header
    %s10 = sphi 0, %s14
    %p11 = scmp.ge.s32.totalorder %s10, 4
    %s17 = sphi 0, %s29
    %s18 = sphi 0, %s25
    %s19 = sphi 0, %s17
    %s20 = sphi 0, %s18
    %s21 = sphi 0, %s19
    %s22 = sphi 0, %s20
    %s34 = sphi 0, %s36
    %s37 = sphi 0, %s34
    %s38 = sphi 0, %s37
    %s54 = sphi 0, %s38
    %s62 = sphi 0, %s64
    %s65 = sphi 0, %s62
    %s66 = sphi 0, %s65
    %s82 = sphi 0, %s66
    %s86 = sphi 0, %s86
    %s88 = sphi 0, %s86
    %s89 = sphi 0, %s88
    %s103 = sphi 0, %s89
    %s109 = sphi 0, %s111
    %s112 = sphi 0, %s109
    %s113 = sphi 0, %s112
    %s129 = sphi 0, %s113
    %s137 = sphi 0, %s139
    %s140 = sphi 0, %s137
    %s141 = sphi 0, %s140
    %s157 = sphi 0, %s141
  $region4: #{fno_block_forward.3} parent=0 // loop_header_branch
    %13 = sbr.rel (%p11) target = $region8
  $region5: #{fno_block_forward.3} parent=0 // loop_body
    %s15 = ssub.s32 %s10, 1
    %s16 = ssub.s32 %s10, 2
    %s23 = sadd.s32 1, %s18
    %p24 = scmp.ge.s32.totalorder %s23, 1
    %s25 = scalar_select %p24, 0, %s23
    %s26 = sadd.s32 1, %s17
    %s27 = scalar_select %p24, %s26, %s17
    %p28 = scmp.ge.s32.totalorder %s27, 2
    %s29 = scalar_select %p28, 0, %s27
    %s30 = ssub.s32 %s17, %s29
    %s31 = ssub.s32 %s18, %s25
    %s32 = sor.u32 %s30, %s31
    %p33 = scmp.eq.s32.totalorder %s32, 0
    %s35 = sadd.s32 %s34, 1
    %s36 = scalar_select %p33, %s34, %s35
    %p39 = pneg %p33
    %p40 = scmp.eq.s32.totalorder %s10, 1
    %p41 = por %p39, %p40
    %p42 = scmp.ne.s32.totalorder %s34, %s37
    %p43 = scmp.eq.s32.totalorder %s10, 0
    %p44 = por %p42, %p43
    %p45 = scmp.ne.s32.totalorder %s34, %s37
    %p46 = scmp.eq.s32.totalorder %s15, 1
    %p47 = por %p45, %p46
    %p48 = scmp.ne.s32.totalorder %s37, %s38
    %p49 = scmp.eq.s32.totalorder %s15, 0
    %p50 = por %p48, %p49
    %p51 = scmp.ne.s32.totalorder %s37, %s38
    %p52 = scmp.eq.s32.totalorder %s16, 1
    %p53 = por %p51, %p52
    %p55 = scmp.ne.s32.totalorder %s38, %s54
    %p56 = scmp.eq.s32.totalorder %s16, 0
    %p57 = por %p55, %p56
    %s58 = ssub.s32 %s17, %s29
    %s59 = ssub.s32 %s18, %s25
    %s60 = sor.u32 %s58, %s59
    %p61 = scmp.eq.s32.totalorder %s60, 0
    %s63 = sadd.s32 %s62, 1
    %s64 = scalar_select %p61, %s62, %s63
    %p67 = pneg %p61
    %p68 = scmp.eq.s32.totalorder %s10, 1
    %p69 = por %p67, %p68
    %p70 = scmp.ne.s32.totalorder %s62, %s65
    %p71 = scmp.eq.s32.totalorder %s10, 0
    %p72 = por %p70, %p71
    %p73 = scmp.ne.s32.totalorder %s62, %s65
    %p74 = scmp.eq.s32.totalorder %s15, 1
    %p75 = por %p73, %p74
    %p76 = scmp.ne.s32.totalorder %s65, %s66
    %p77 = scmp.eq.s32.totalorder %s15, 0
    %p78 = por %p76, %p77
    %p79 = scmp.ne.s32.totalorder %s65, %s66
    %p80 = scmp.eq.s32.totalorder %s16, 1
    %p81 = por %p79, %p80
    %p83 = scmp.ne.s32.totalorder %s66, %s82
    %p84 = scmp.eq.s32.totalorder %s16, 0
    %p85 = por %p83, %p84
    %s87 = sadd.s32 %s86, 1
    %p90 = scmp.eq.s32.totalorder %s10, 1
    %p91 = scmp.ne.s32.totalorder %s86, %s88
    %p92 = scmp.eq.s32.totalorder %s10, 0
    %p93 = por %p91, %p92
    %p94 = scmp.ne.s32.totalorder %s86, %s88
    %p95 = scmp.eq.s32.totalorder %s15, 1
    %p96 = por %p94, %p95
    %p97 = scmp.ne.s32.totalorder %s88, %s89
    %p98 = scmp.eq.s32.totalorder %s15, 0
    %p99 = por %p97, %p98
    %p100 = scmp.ne.s32.totalorder %s88, %s89
    %p101 = scmp.eq.s32.totalorder %s16, 1
    %p102 = por %p100, %p101
    %p104 = scmp.ne.s32.totalorder %s89, %s103
    %p105 = scmp.eq.s32.totalorder %s16, 0
    %p106 = por %p104, %p105
    %s107 = ssub.s32 %s17, %s29
    %p108 = scmp.eq.s32.totalorder %s107, 0
    %s110 = sadd.s32 %s109, 1
    %s111 = scalar_select %p108, %s109, %s110
    %p114 = pneg %p108
    %p115 = scmp.eq.s32.totalorder %s10, 1
    %p116 = por %p114, %p115
    %p117 = scmp.ne.s32.totalorder %s109, %s112
    %p118 = scmp.eq.s32.totalorder %s10, 0
    %p119 = por %p117, %p118
    %p120 = scmp.ne.s32.totalorder %s109, %s112
    %p121 = scmp.eq.s32.totalorder %s15, 1
    %p122 = por %p120, %p121
    %p123 = scmp.ne.s32.totalorder %s112, %s113
    %p124 = scmp.eq.s32.totalorder %s15, 0
    %p125 = por %p123, %p124
    %p126 = scmp.ne.s32.totalorder %s112, %s113
    %p127 = scmp.eq.s32.totalorder %s16, 1
    %p128 = por %p126, %p127
    %p130 = scmp.ne.s32.totalorder %s113, %s129
    %p131 = scmp.eq.s32.totalorder %s16, 0
    %p132 = por %p130, %p131
    %s133 = ssub.s32 %s17, %s29
    %s134 = ssub.s32 %s18, %s25
    %s135 = sor.u32 %s133, %s134
    %p136 = scmp.eq.s32.totalorder %s135, 0
    %s138 = sadd.s32 %s137, 1
    %s139 = scalar_select %p136, %s137, %s138
    %p142 = pneg %p136
    %p143 = scmp.eq.s32.totalorder %s10, 1
    %p144 = por %p142, %p143
    %p145 = scmp.ne.s32.totalorder %s137, %s140
    %p146 = scmp.eq.s32.totalorder %s10, 0
    %p147 = por %p145, %p146
    %p148 = scmp.ne.s32.totalorder %s137, %s140
    %p149 = scmp.eq.s32.totalorder %s15, 1
    %p150 = por %p148, %p149
    %p151 = scmp.ne.s32.totalorder %s140, %s141
    %p152 = scmp.eq.s32.totalorder %s15, 0
    %p153 = por %p151, %p152
    %p154 = scmp.ne.s32.totalorder %s140, %s141
    %p155 = scmp.eq.s32.totalorder %s16, 1
    %p156 = por %p154, %p155
    %p158 = scmp.ne.s32.totalorder %s141, %s157
    %p159 = scmp.eq.s32.totalorder %s16, 0
    %p160 = por %p158, %p159
    %p161 = scmp.le.s32.totalorder 1, %s10
    %p162 = scmp.lt.s32.totalorder %s10, 3
    %p163 = pnand %p161, %p162
    %p164 = pneg %p163
    // Predicated region
    $region9: #{fno_block_forward.3} parent=5 // pred_check
      _
    $region10: #{fno_block_forward.3} parent=5 // pred_check_branch
      %166 = sbr.rel (%p163) target = $region12
    $region11: #{fno_block_forward.3} parent=5 // pred_region
      %s167 = ssub.s32 %s10, 1
      // Predicated region
      $region13: #{fno_block_forward.3} parent=11 // pred_check
        %p168 = pneg %p99
      $region14: #{fno_block_forward.3} parent=11 // pred_check_branch
        %170 = sbr.rel (%p168) target = $region16
      $region15: #{fno_block_forward.3} parent=11 // pred_region
        _
      $region16: #{fno_block_forward.3} parent=11 // pred_fallthru
        _
    $region12: #{fno_block_forward.3} parent=5 // pred_fallthru
      _
    %p171 = scmp.lt.s32.totalorder %s10, 2
    // Predicated region
    $region17: #{fno_block_forward.3} parent=5 // pred_check
      %p172 = pneg %p171
    $region18: #{fno_block_forward.3} parent=5 // pred_check_branch
      %174 = sbr.rel (%p172) target = $region20
    $region19: #{fno_block_forward.3} parent=5 // pred_region
      // Predicated region
      $region21: #{fno_block_forward.3} parent=19 // pred_check
        %p175 = pneg %p44
      $region22: #{fno_block_forward.3} parent=19 // pred_check_branch
        %177 = sbr.rel (%p175) target = $region24
      $region23: #{fno_block_forward.3} parent=19 // pred_region
        %s178 = smul.u32 4, %s18
        %p179 = scmp.lt.s32.totalorder %s17, 1
        %s180 = scalar_select %p179, %s17, 1
        %p181 = scmp.lt.s32.totalorder %s178, 3
        %s182 = scalar_select %p181, %s178, 3
        %s183 = smul.addr %s180, 4
        %s184 = sadd.s32 %s182, %s183
        %s185 = smul.addr %s184, 8
        %s186 = scalar_lea.vmem %s0, %s185
        %s187 = smul.u32 4, %s18
      $region24: #{fno_block_forward.3} parent=19 // pred_fallthru
        _
      // Predicated region
      $region25: #{fno_block_forward.3} parent=19 // pred_check
        %p188 = pneg %p72
      $region26: #{fno_block_forward.3} parent=19 // pred_check_branch
        %190 = sbr.rel (%p188) target = $region28
      $region27: #{fno_block_forward.3} parent=19 // pred_region
        %s191 = smul.u32 4, %s18
        %p192 = scmp.lt.s32.totalorder %s17, 1
        %s193 = scalar_select %p192, %s17, 1
        %p194 = scmp.lt.s32.totalorder %s191, 3
        %s195 = scalar_select %p194, %s191, 3
        %s196 = smul.addr %s193, 4
        %s197 = sadd.s32 %s195, %s196
        %s198 = smul.addr %s197, 8
        %s199 = scalar_lea.vmem %s1, %s198
        %s200 = smul.u32 4, %s18
      $region28: #{fno_block_forward.3} parent=19 // pred_fallthru
        _
      // Predicated region
      $region29: #{fno_block_forward.3} parent=19 // pred_check
        %p201 = pneg %p119
      $region30: #{fno_block_forward.3} parent=19 // pred_check_branch
        %203 = sbr.rel (%p201) target = $region32
      $region31: #{fno_block_forward.3} parent=19 // pred_region
        %p204 = scmp.lt.s32.totalorder %s17, 1
        %s205 = scalar_select %p204, %s17, 1
        %s206 = smul.addr %s205, 8
        %s207 = scalar_lea.vmem %s3, %s206
      $region32: #{fno_block_forward.3} parent=19 // pred_fallthru
        _
    $region20: #{fno_block_forward.3} parent=5 // pred_fallthru
      _
    %p208 = scmp.le.s32.totalorder 1, %s10
    %p209 = scmp.lt.s32.totalorder %s10, 3
    %p210 = pnand %p208, %p209
    %p211 = pneg %p210
    // Predicated region
    $region33: #{fno_block_forward.3} parent=5 // pred_check
      _
    $region34: #{fno_block_forward.3} parent=5 // pred_check_branch
      %213 = sbr.rel (%p210) target = $region36
    $region35: #{fno_block_forward.3} parent=5 // pred_region
      %s214 = ssub.s32 %s10, 1
      %s215 = smul.u32 4, %s20
      %p216 = scmp.lt.s32.totalorder %s19, 1
      %s217 = scalar_select %p216, %s19, 1
      %p218 = scmp.lt.s32.totalorder %s215, 3
      %s219 = scalar_select %p218, %s215, 3
      %s220 = smul.addr %s217, 4
      %s221 = sadd.s32 %s219, %s220
      %s222 = smul.addr %s221, 8
      %s223 = scalar_lea.vmem %s0, %s222
      %p224 = pneg %p50
      %p225 = pneg %p47
      %s226 = smul.u32 4, %s20
      %p227 = scmp.lt.s32.totalorder %s19, 1
      %s228 = scalar_select %p227, %s19, 1
      %p229 = scmp.lt.s32.totalorder %s226, 3
      %s230 = scalar_select %p229, %s226, 3
      %s231 = smul.addr %s228, 4
      %s232 = sadd.s32 %s230, %s231
      %s233 = smul.addr %s232, 8
      %s234 = scalar_lea.vmem %s1, %s233
      %p235 = pneg %p78
      %p236 = pneg %p75
      %p237 = pneg %p99
      %p238 = pneg %p96
      %p239 = scmp.lt.s32.totalorder %s19, 1
      %s240 = scalar_select %p239, %s19, 1
      %s241 = smul.addr %s240, 8
      %s242 = scalar_lea.vmem %s3, %s241
      %p243 = pneg %p125
      %p244 = pneg %p122
      %p245 = pneg %p153
      %p246 = pneg %p150
      %s247 = smul.u32 4, %s20
      %p248 = scmp.lt.s32.totalorder %s19, 1
      %s249 = scalar_select %p248, %s19, 1
      %p250 = scmp.lt.s32.totalorder %s247, 3
      %s251 = scalar_select %p250, %s247, 3
      %s252 = smul.addr %s249, 4
      %s253 = sadd.s32 %s251, %s252
      %s254 = smul.addr %s253, 8
      %s255 = scalar_lea.vmem %s4, %s254
      %s256 = smul.u32 4, %s20
      %p257 = scmp.lt.s32.totalorder %s19, 1
      %s258 = scalar_select %p257, %s19, 1
      %p259 = scmp.lt.s32.totalorder %s256, 3
      %s260 = scalar_select %p259, %s256, 3
      %s261 = smul.addr %s258, 4
      %s262 = sadd.s32 %s260, %s261
      %s263 = smul.addr %s262, 8
      %s264 = scalar_lea.vmem %s0, %s263
      %s265 = smul.u32 4, %s20
      %s266 = smul.u32 4, %s20
      %p267 = scmp.lt.s32.totalorder %s19, 1
      %s268 = scalar_select %p267, %s19, 1
      %p269 = scmp.lt.s32.totalorder %s266, 3
      %s270 = scalar_select %p269, %s266, 3
      %s271 = smul.addr %s268, 4
      %s272 = sadd.s32 %s270, %s271
      %s273 = smul.addr %s272, 8
      %s274 = scalar_lea.vmem %s1, %s273
      %s275 = smul.u32 4, %s20
      %p276 = scmp.lt.s32.totalorder %s19, 1
      %s277 = scalar_select %p276, %s19, 1
      %s278 = smul.addr %s277, 8
      %s279 = scalar_lea.vmem %s3, %s278
      %s280 = smul.u32 4, %s20
      %p281 = scmp.lt.s32.totalorder %s19, 1
      %s282 = scalar_select %p281, %s19, 1
      %p283 = scmp.lt.s32.totalorder %s280, 3
      %s284 = scalar_select %p283, %s280, 3
      %s285 = smul.addr %s282, 4
      %s286 = sadd.s32 %s284, %s285
      %s287 = smul.addr %s286, 8
      %s288 = scalar_lea.vmem %s4, %s287
      %s289 = smul.u32 4, %s20
      %v290 = vld [vmem:[%s264] sm:$0xff]
      %v291 = vld [vmem:[%s264 + $0x8] sm:$0xff]
      %v292 = vld [vmem:[%s264 + $0x10] sm:$0xff]
      %v293 = vld [vmem:[%s264 + $0x18] sm:$0xff]
      %v294 = vld [vmem:[%s2] sm:$0xff]
      %296 = vset.pattern.permute.xlu0 0
      %297 = vperm.xlu0 %296, %v294
      %v298 = vpop.permute.xlu0 %297
      %v300 = vlaneseq
      %v301 = vshrl.u32 %v300, 7
      %v302 = vsub.s32 0, %v301
      %v303 = vrot.slane %v290, %v302
      %v304 = vlaneseq
      %v305 = vshrl.u32 %v304, 7
      %v306 = vsub.s32 0, %v305
      %v307 = vrot.slane %v291, %v306
      %v308 = vlaneseq
      %v309 = vshrl.u32 %v308, 7
      %v310 = vsub.s32 0, %v309
      %v311 = vrot.slane %v292, %v310
      %v312 = vlaneseq
      %v313 = vshrl.u32 %v312, 7
      %v314 = vsub.s32 0, %v313
      %v315 = vrot.slane %v293, %v314
      %v316 = vmul.f32 %v298, %v303
      %v317 = vmul.f32 %v298, %v307
      %v318 = vmul.f32 %v298, %v311
      %v319 = vmul.f32 %v298, %v315
      %320 = vset.pattern.permute.xlu0 1
      %321 = vperm.xlu0 %320, %v294
      %v322 = vpop.permute.xlu0 %321
      %v324 = vlaneseq
      %v325 = vshrl.u32 %v324, 7
      %v326 = vsub.s32 1, %v325
      %v327 = vrot.slane %v290, %v326
      %v328 = vlaneseq
      %v329 = vshrl.u32 %v328, 7
      %v330 = vsub.s32 1, %v329
      %v331 = vrot.slane %v291, %v330
      %v332 = vlaneseq
      %v333 = vshrl.u32 %v332, 7
      %v334 = vsub.s32 1, %v333
      %v335 = vrot.slane %v292, %v334
      %v336 = vlaneseq
      %v337 = vshrl.u32 %v336, 7
      %v338 = vsub.s32 1, %v337
      %v339 = vrot.slane %v293, %v338
      %v340 = vmul.f32 %v322, %v327
      %v341 = vmul.f32 %v322, %v331
      %v342 = vmul.f32 %v322, %v335
      %v343 = vmul.f32 %v322, %v339
      %v344 = vadd.f32 %v316, %v340
      %v345 = vadd.f32 %v317, %v341
      %v346 = vadd.f32 %v318, %v342
      %v347 = vadd.f32 %v319, %v343
      %348 = vset.pattern.permute.xlu0 2
      %349 = vperm.xlu0 %348, %v294
      %v350 = vpop.permute.xlu0 %349
      %v352 = vlaneseq
      %v353 = vshrl.u32 %v352, 7
      %v354 = vsub.s32 2, %v353
      %v355 = vrot.slane %v290, %v354
      %v356 = vlaneseq
      %v357 = vshrl.u32 %v356, 7
      %v358 = vsub.s32 2, %v357
      %v359 = vrot.slane %v291, %v358
      %v360 = vlaneseq
      %v361 = vshrl.u32 %v360, 7
      %v362 = vsub.s32 2, %v361
      %v363 = vrot.slane %v292, %v362
      %v364 = vlaneseq
      %v365 = vshrl.u32 %v364, 7
      %v366 = vsub.s32 2, %v365
      %v367 = vrot.slane %v293, %v366
      %v368 = vmul.f32 %v350, %v355
      %v369 = vmul.f32 %v350, %v359
      %v370 = vmul.f32 %v350, %v363
      %v371 = vmul.f32 %v350, %v367
      %v372 = vadd.f32 %v344, %v368
      %v373 = vadd.f32 %v345, %v369
      %v374 = vadd.f32 %v346, %v370
      %v375 = vadd.f32 %v347, %v371
      %376 = vset.pattern.permute.xlu0 3
      %377 = vperm.xlu0 %376, %v294
      %v378 = vpop.permute.xlu0 %377
      %v380 = vlaneseq
      %v381 = vshrl.u32 %v380, 7
      %v382 = vsub.s32 3, %v381
      %v383 = vrot.slane %v290, %v382
      %v384 = vlaneseq
      %v385 = vshrl.u32 %v384, 7
      %v386 = vsub.s32 3, %v385
      %v387 = vrot.slane %v291, %v386
      %v388 = vlaneseq
      %v389 = vshrl.u32 %v388, 7
      %v390 = vsub.s32 3, %v389
      %v391 = vrot.slane %v292, %v390
      %v392 = vlaneseq
      %v393 = vshrl.u32 %v392, 7
      %v394 = vsub.s32 3, %v393
      %v395 = vrot.slane %v293, %v394
      %v396 = vmul.f32 %v378, %v383
      %v397 = vmul.f32 %v378, %v387
      %v398 = vmul.f32 %v378, %v391
      %v399 = vmul.f32 %v378, %v395
      %v400 = vadd.f32 %v372, %v396
      %v401 = vadd.f32 %v373, %v397
      %v402 = vadd.f32 %v374, %v398
      %v403 = vadd.f32 %v375, %v399
      %404 = vset.pattern.permute.xlu0 4
      %405 = vperm.xlu0 %404, %v294
      %v406 = vpop.permute.xlu0 %405
      %v408 = vlaneseq
      %v409 = vshrl.u32 %v408, 7
      %v410 = vsub.s32 4, %v409
      %v411 = vrot.slane %v290, %v410
      %v412 = vlaneseq
      %v413 = vshrl.u32 %v412, 7
      %v414 = vsub.s32 4, %v413
      %v415 = vrot.slane %v291, %v414
      %v416 = vlaneseq
      %v417 = vshrl.u32 %v416, 7
      %v418 = vsub.s32 4, %v417
      %v419 = vrot.slane %v292, %v418
      %v420 = vlaneseq
      %v421 = vshrl.u32 %v420, 7
      %v422 = vsub.s32 4, %v421
      %v423 = vrot.slane %v293, %v422
      %v424 = vmul.f32 %v406, %v411
      %v425 = vmul.f32 %v406, %v415
      %v426 = vmul.f32 %v406, %v419
      %v427 = vmul.f32 %v406, %v423
      %v428 = vadd.f32 %v400, %v424
      %v429 = vadd.f32 %v401, %v425
      %v430 = vadd.f32 %v402, %v426
      %v431 = vadd.f32 %v403, %v427
      %432 = vset.pattern.permute.xlu0 5
      %433 = vperm.xlu0 %432, %v294
      %v434 = vpop.permute.xlu0 %433
      %v436 = vlaneseq
      %v437 = vshrl.u32 %v436, 7
      %v438 = vsub.s32 5, %v437
      %v439 = vrot.slane %v290, %v438
      %v440 = vlaneseq
      %v441 = vshrl.u32 %v440, 7
      %v442 = vsub.s32 5, %v441
      %v443 = vrot.slane %v291, %v442
      %v444 = vlaneseq
      %v445 = vshrl.u32 %v444, 7
      %v446 = vsub.s32 5, %v445
      %v447 = vrot.slane %v292, %v446
      %v448 = vlaneseq
      %v449 = vshrl.u32 %v448, 7
      %v450 = vsub.s32 5, %v449
      %v451 = vrot.slane %v293, %v450
      %v452 = vmul.f32 %v434, %v439
      %v453 = vmul.f32 %v434, %v443
      %v454 = vmul.f32 %v434, %v447
      %v455 = vmul.f32 %v434, %v451
      %v456 = vadd.f32 %v428, %v452
      %v457 = vadd.f32 %v429, %v453
      %v458 = vadd.f32 %v430, %v454
      %v459 = vadd.f32 %v431, %v455
      %460 = vset.pattern.permute.xlu0 6
      %461 = vperm.xlu0 %460, %v294
      %v462 = vpop.permute.xlu0 %461
      %v464 = vlaneseq
      %v465 = vshrl.u32 %v464, 7
      %v466 = vsub.s32 6, %v465
      %v467 = vrot.slane %v290, %v466
      %v468 = vlaneseq
      %v469 = vshrl.u32 %v468, 7
      %v470 = vsub.s32 6, %v469
      %v471 = vrot.slane %v291, %v470
      %v472 = vlaneseq
      %v473 = vshrl.u32 %v472, 7
      %v474 = vsub.s32 6, %v473
      %v475 = vrot.slane %v292, %v474
      %v476 = vlaneseq
      %v477 = vshrl.u32 %v476, 7
      %v478 = vsub.s32 6, %v477
      %v479 = vrot.slane %v293, %v478
      %v480 = vmul.f32 %v462, %v467
      %v481 = vmul.f32 %v462, %v471
      %v482 = vmul.f32 %v462, %v475
      %v483 = vmul.f32 %v462, %v479
      %v484 = vadd.f32 %v456, %v480
      %v485 = vadd.f32 %v457, %v481
      %v486 = vadd.f32 %v458, %v482
      %v487 = vadd.f32 %v459, %v483
      %488 = vset.pattern.permute.xlu0 7
      %489 = vperm.xlu0 %488, %v294
      %v490 = vpop.permute.xlu0 %489
      %v492 = vlaneseq
      %v493 = vshrl.u32 %v492, 7
      %v494 = vsub.s32 7, %v493
      %v495 = vrot.slane %v290, %v494
      %v496 = vlaneseq
      %v497 = vshrl.u32 %v496, 7
      %v498 = vsub.s32 7, %v497
      %v499 = vrot.slane %v291, %v498
      %v500 = vlaneseq
      %v501 = vshrl.u32 %v500, 7
      %v502 = vsub.s32 7, %v501
      %v503 = vrot.slane %v292, %v502
      %v504 = vlaneseq
      %v505 = vshrl.u32 %v504, 7
      %v506 = vsub.s32 7, %v505
      %v507 = vrot.slane %v293, %v506
      %v508 = vmul.f32 %v490, %v495
      %v509 = vmul.f32 %v490, %v499
      %v510 = vmul.f32 %v490, %v503
      %v511 = vmul.f32 %v490, %v507
      %v512 = vadd.f32 %v484, %v508
      %v513 = vadd.f32 %v485, %v509
      %v514 = vadd.f32 %v486, %v510
      %v515 = vadd.f32 %v487, %v511
      %v516 = vld [vmem:[%s279] sm:$0xff]
      %518 = vset.pattern.permute.xlu0 0
      %519 = vperm.xlu0 %518, %v516
      %v520 = vpop.permute.xlu0 %519
      %v522 = vadd.f32 %v512, %v520
      %v523 = vadd.f32 %v513, %v520
      %v524 = vadd.f32 %v514, %v520
      %v525 = vadd.f32 %v515, %v520
      %v526 = vld [vmem:[%s274] sm:$0xff]
      %v527 = vld [vmem:[%s274 + $0x8] sm:$0xff]
      %v528 = vld [vmem:[%s274 + $0x10] sm:$0xff]
      %v529 = vld [vmem:[%s274 + $0x18] sm:$0xff]
      %v530 = vadd.f32 %v522, %v526
      %v531 = vadd.f32 %v523, %v527
      %v532 = vadd.f32 %v524, %v528
      %v533 = vadd.f32 %v525, %v529
      %v534 = vmul.f32 %v530, 0.5
      %v535 = vmul.f32 %v531, 0.5
      %v536 = vmul.f32 %v532, 0.5
      %v537 = vmul.f32 %v533, 0.5
      %v538 = vmul.f32 %v530, 0.70710677
      %v539 = vmul.f32 %v531, 0.70710677
      %v540 = vmul.f32 %v532, 0.70710677
      %v541 = vmul.f32 %v533, 0.70710677
      %vm542 = vcmp.ge.f32.partialorder %v538, 0.0
      %vm543 = vcmp.ge.f32.partialorder %v539, 0.0
      %vm544 = vcmp.ge.f32.partialorder %v540, 0.0
      %vm545 = vcmp.ge.f32.partialorder %v541, 0.0
      %v546 = vsel %vm542, 1.0, -1.0
      %v547 = vsel %vm543, 1.0, -1.0
      %v548 = vsel %vm544, 1.0, -1.0
      %v549 = vsel %vm545, 1.0, -1.0
      %v550 = vand.u32 2147483647, %v538
      %v551 = vand.u32 2147483647, %v539
      %v552 = vand.u32 2147483647, %v540
      %v553 = vand.u32 2147483647, %v541
      %v554 = vmul.f32 %v550, 0.3275911
      %v555 = vmul.f32 %v551, 0.3275911
      %v556 = vmul.f32 %v552, 0.3275911
      %v557 = vmul.f32 %v553, 0.3275911
      %v558 = vadd.f32 %v554, 1.0
      %v559 = vadd.f32 %v555, 1.0
      %v560 = vadd.f32 %v556, 1.0
      %v561 = vadd.f32 %v557, 1.0
      %v562 = vrcp.pop %v558
      %v563 = vrcp.pop %v559
      %v564 = vrcp.pop %v560
      %v565 = vrcp.pop %v561
      %v566 = vmul.f32 %v562, 1.0614054
      %v567 = vmul.f32 %v563, 1.0614054
      %v568 = vmul.f32 %v564, 1.0614054
      %v569 = vmul.f32 %v565, 1.0614054
      %v570 = vadd.f32 %v566, -1.4531521
      %v571 = vadd.f32 %v567, -1.4531521
      %v572 = vadd.f32 %v568, -1.4531521
      %v573 = vadd.f32 %v569, -1.4531521
      %v574 = vmul.f32 %v570, %v562
      %v575 = vmul.f32 %v571, %v563
      %v576 = vmul.f32 %v572, %v564
      %v577 = vmul.f32 %v573, %v565
      %v578 = vadd.f32 %v574, 1.4214138
      %v579 = vadd.f32 %v575, 1.4214138
      %v580 = vadd.f32 %v576, 1.4214138
      %v581 = vadd.f32 %v577, 1.4214138
      %v582 = vmul.f32 %v578, %v562
      %v583 = vmul.f32 %v579, %v563
      %v584 = vmul.f32 %v580, %v564
      %v585 = vmul.f32 %v581, %v565
      %v586 = vadd.f32 %v582, -0.28449672
      %v587 = vadd.f32 %v583, -0.28449672
      %v588 = vadd.f32 %v584, -0.28449672
      %v589 = vadd.f32 %v585, -0.28449672
      %v590 = vmul.f32 %v586, %v562
      %v591 = vmul.f32 %v587, %v563
      %v592 = vmul.f32 %v588, %v564
      %v593 = vmul.f32 %v589, %v565
      %v594 = vadd.f32 %v590, 0.2548296
      %v595 = vadd.f32 %v591, 0.2548296
      %v596 = vadd.f32 %v592, 0.2548296
      %v597 = vadd.f32 %v593, 0.2548296
      %v598 = vmul.f32 %v594, %v562
      %v599 = vmul.f32 %v595, %v563
      %v600 = vmul.f32 %v596, %v564
      %v601 = vmul.f32 %v597, %v565
      %v602 = vsub.f32 0.0, %v550
      %v603 = vsub.f32 0.0, %v551
      %v604 = vsub.f32 0.0, %v552
      %v605 = vsub.f32 0.0, %v553
      %v606 = vmul.f32 %v602, %v550
      %v607 = vmul.f32 %v603, %v551
      %v608 = vmul.f32 %v604, %v552
      %v609 = vmul.f32 %v605, %v553
      %v610 = vmul.f32 %v606, 1.442695
      %v611 = vpow.pop %v610
      %v612 = vmul.f32 %v607, 1.442695
      %v613 = vpow.pop %v612
      %v614 = vmul.f32 %v608, 1.442695
      %v615 = vpow.pop %v614
      %v616 = vmul.f32 %v609, 1.442695
      %v617 = vpow.pop %v616
      %v618 = vmul.f32 %v598, %v611
      %v619 = vmul.f32 %v599, %v613
      %v620 = vmul.f32 %v600, %v615
      %v621 = vmul.f32 %v601, %v617
      %v622 = vsub.f32 1.0, %v618
      %v623 = vsub.f32 1.0, %v619
      %v624 = vsub.f32 1.0, %v620
      %v625 = vsub.f32 1.0, %v621
      %v626 = vmul.f32 %v546, %v622
      %v627 = vmul.f32 %v547, %v623
      %v628 = vmul.f32 %v548, %v624
      %v629 = vmul.f32 %v549, %v625
      %v630 = vadd.f32 %v626, 1.0
      %v631 = vadd.f32 %v627, 1.0
      %v632 = vadd.f32 %v628, 1.0
      %v633 = vadd.f32 %v629, 1.0
      %v634 = vmul.f32 %v534, %v630
      %v635 = vmul.f32 %v535, %v631
      %v636 = vmul.f32 %v536, %v632
      %v637 = vmul.f32 %v537, %v633
      %638 = vst [vmem:[%s288] sm:$0xff] %v634
      %639 = vst [vmem:[%s288 + $0x8] sm:$0xff] %v635
      %640 = vst [vmem:[%s288 + $0x10] sm:$0xff] %v636
      %641 = vst [vmem:[%s288 + $0x18] sm:$0xff] %v637
      %s642 = smul.u32 4, %s20
      %p643 = scmp.lt.s32.totalorder %s19, 1
      %s644 = scalar_select %p643, %s19, 1
      %p645 = scmp.lt.s32.totalorder %s642, 3
      %s646 = scalar_select %p645, %s642, 3
      %s647 = smul.addr %s644, 4
      %s648 = sadd.s32 %s646, %s647
      %s649 = smul.addr %s648, 8
      %s650 = scalar_lea.vmem %s4, %s649
      // Predicated region
      $region37: #{fno_block_forward.3} parent=35 // pred_check
        %p651 = pneg %p150
      $region38: #{fno_block_forward.3} parent=35 // pred_check_branch
        %653 = sbr.rel (%p651) target = $region40
      $region39: #{fno_block_forward.3} parent=35 // pred_region
        %s654 = smul.u32 4, %s20
      $region40: #{fno_block_forward.3} parent=35 // pred_fallthru
        _
    $region36: #{fno_block_forward.3} parent=5 // pred_fallthru
      _
    %p655 = scmp.le.s32.totalorder 2, %s10
    // Predicated region
    $region41: #{fno_block_forward.3} parent=5 // pred_check
      %p656 = pneg %p655
    $region42: #{fno_block_forward.3} parent=5 // pred_check_branch
      %658 = sbr.rel (%p656) target = $region44
    $region43: #{fno_block_forward.3} parent=5 // pred_region
      %s659 = ssub.s32 %s10, 2
      // Predicated region
      $region45: #{fno_block_forward.3} parent=43 // pred_check
        %p660 = pneg %p156
      $region46: #{fno_block_forward.3} parent=43 // pred_check_branch
        %662 = sbr.rel (%p660) target = $region48
      $region47: #{fno_block_forward.3} parent=43 // pred_region
        %s663 = smul.u32 4, %s22
        %p664 = scmp.lt.s32.totalorder %s21, 1
        %s665 = scalar_select %p664, %s21, 1
        %p666 = scmp.lt.s32.totalorder %s663, 3
        %s667 = scalar_select %p666, %s663, 3
        %s668 = smul.addr %s665, 4
        %s669 = sadd.s32 %s667, %s668
        %s670 = smul.addr %s669, 8
        %s671 = scalar_lea.vmem %s4, %s670
      $region48: #{fno_block_forward.3} parent=43 // pred_fallthru
        _
    $region44: #{fno_block_forward.3} parent=5 // pred_fallthru
      _
  $region6: #{fno_block_forward.3} parent=0 // loop_footer
    %s14 = sadd.s32 1, %s10
  $region7: #{fno_block_forward.3} parent=0 // loop_footer_branch
    %9 = sbr.rel target = $region3
  $region8: #{fno_block_forward.3} parent=0 // loop_exit
    _

</llo_original>
